<compile_context>
chip_gen: v6e
topology: v6e:2x2x1
jax: 0.10.0
libtpu: 0.0.40
codegen_flags: <defaults>
</compile_context>

<pallas_src>
import math

import jax
import jax.numpy as jnp
from jax.experimental import pallas as pl
from jax.experimental.pallas import tpu as pltpu

PI = 3.1415926  # same constant as the PyTorch module

_DIMS_AVG = ((1.63, 1.53, 3.88), (1.73, 0.67, 0.88), (1.7, 0.58, 1.78))

# Packed-input row layout (channels on sublanes, objects on lanes):
_R_PRED = 0        # 8 rows: gathered regression channels
_R_TGT = 8         # 8 rows: target regression channels
_R_CTX = 16        # 3d-center x on the feature map
_R_CTY = 17        # 3d-center y
_R_MASK = 18       # reg_mask
_R_FLIP = 19       # flip_mask
_R_ROTY = 20       # target roty
_R_AVG = 21        # 3 rows: per-object class-average dims (h, w, l)
_R_FMAT = 24       # 9 rows: fused A = K_inv @ trans_inv (lane-broadcast per object)
_N_ROWS = 33
_ROWS_PAD = 40     # sublane-padded row count (multiple of 8)
_LANE_CHUNK = 2048 # max objects (lanes) processed per grid step


def _atan(x):
    """float32-accurate arctan (Cephes atanf polynomial), VPU-only ops."""
    ax = jnp.abs(x)
    big = ax > 2.414213562373095      # tan(3*pi/8)
    mid = ax > 0.4142135623730950     # tan(pi/8)
    xr = jnp.where(big, -1.0 / ax, jnp.where(mid, (ax - 1.0) / (ax + 1.0), ax))
    y0 = jnp.where(big, math.pi / 2, jnp.where(mid, math.pi / 4, 0.0))
    z = xr * xr
    poly = ((((8.05374449538e-2 * z - 1.38776856032e-1) * z
              + 1.99777106478e-1) * z - 3.33329491539e-1) * z * xr + xr)
    res = y0 + poly
    return jnp.where(x < 0, -res, res)


def _reg3d_loss_kernel(x_ref, out_ref):
    def row(r):
        return x_ref[r:r + 1, :]          # (1, chunk) sublane slice

    mask = row(_R_MASK)
    # mask is applied to the raw offsets before decoding (matches reference)
    p = [row(_R_PRED + c) * mask for c in range(8)]
    g = [row(_R_TGT + c) * mask for c in range(8)]
    ctx, cty = row(_R_CTX), row(_R_CTY)
    fm = row(_R_FLIP)
    roty_g = row(_R_ROTY)
    avg_h, avg_w, avg_l = row(_R_AVG), row(_R_AVG + 1), row(_R_AVG + 2)
    a = [row(_R_FMAT + k) for k in range(9)]

    # ---- depth_decode ----
    pred_depth = p[0] * 16.32 + 28.01
    gt_depth = g[0] * 16.32 + 28.01

    # ---- locations_decode: depth * (A @ [ct + off, 1]), A = K_inv @ trans_inv
    def decode_loc(ox, oy, depth):
        rx = ctx + ox
        ry = cty + oy
        lx = (a[0] * rx + a[1] * ry + a[2]) * depth
        ly = (a[3] * rx + a[4] * ry + a[5]) * depth
        lz = (a[6] * rx + a[7] * ry + a[8]) * depth
        return lx, ly, lz

    plx, ply, plz = decode_loc(p[1], p[2], pred_depth)
    glx, gly, glz = decode_loc(g[1], g[2], gt_depth)

    # ---- dimension_decode (class averages precomputed in the wrapper) ----
    ph = jnp.exp(p[3]) * avg_h
    pw = jnp.exp(p[4]) * avg_w
    plen = jnp.exp(p[5]) * avg_l
    gh = jnp.exp(g[3]) * avg_h
    gw = jnp.exp(g[4]) * avg_w
    glen = jnp.exp(g[5]) * avg_l

    # locations[:, 1] += dimensions[:, 0] / 2
    ply = ply + 0.5 * ph
    gly = gly + 0.5 * gh

    # ---- orientation_decode(pred_ori, gt_locations, flip_mask) ----
    offsets = _atan(glx / glz + 1e-07)
    alpha = _atan(p[6] / (p[7] + 1e-07))
    alpha = jnp.where(p[7] >= 0, alpha - PI / 2, alpha + PI / 2)
    rotys = alpha + offsets
    rotys = jnp.where(rotys > PI, rotys - 2 * PI, rotys)
    rotys = jnp.where(rotys < -PI, rotys + 2 * PI, rotys)
    rotys_flip = fm * rotys
    rotys_flip = jnp.where(rotys_flip > 0, rotys_flip - PI,
                           jnp.where(rotys_flip < 0, rotys_flip + PI,
                                     rotys_flip))
    rotys_all = fm * rotys_flip + (1.0 - fm) * rotys

    pred_rotys = mask * rotys_all
    gt_rotys = mask * roty_g

    # sin/cos computed exactly once each (4 transcendental vectors total)
    cp, sp = jnp.cos(pred_rotys), jnp.sin(pred_rotys)
    cg, sg = jnp.cos(gt_rotys), jnp.sin(gt_rotys)

    # ---- L1 corner sums, collapsed algebraically (shared "+location" and
    # identical Y terms cancel exactly, corners never materialized) ----
    # rotys branch: points_decode(pred_rotys, gt_dim, gt_loc) vs gt box
    dcr, dsr = cp - cg, sp - sg
    acc = 2.0 * (jnp.abs(dcr * glen + dsr * gh) + jnp.abs(dcr * glen - dsr * gh)
                 + jnp.abs(dcr * gh - dsr * glen) + jnp.abs(dcr * gh + dsr * glen))

    # dims branch: points_decode(gt_rotys, pred_dim, gt_loc) vs gt box
    dl, dh, dw = plen - glen, ph - gh, pw - gw
    acc = acc + 2.0 * (jnp.abs(cg * dl + sg * dh) + jnp.abs(cg * dl - sg * dh)
                       + jnp.abs(cg * dh - sg * dl) + jnp.abs(cg * dh + sg * dl))
    acc = acc + 4.0 * jnp.abs(dw)

    # locs branch: rotation & dims shared -> every corner diff is dloc
    acc = acc + 8.0 * (jnp.abs(plx - glx) + jnp.abs(ply - gly)
                       + jnp.abs(plz - glz))

    out_ref[...] = jnp.sum(acc, keepdims=True)   # (1, 1) partial sum


def _round_up(x, m):
    return ((x + m - 1) // m) * m


@jax.jit
def reg3d_loss_iou(output, ind, cls_id, reg_mask, flip_mask, ct3d, reg_3d,
                   roty, K, trans):
    B, C, H, W = output.shape
    M = ind.shape[1]
    n = B * M

    # ---- _tranpose_and_gather_feat: gather contiguous C-length rows from the
    # (B, HW, C) view; only the tiny (n, 8) result is upcast to f32.
    feat = jnp.swapaxes(output.reshape(B, C, H * W), 1, 2)           # (B, HW, C)
    pred = jnp.take_along_axis(feat, ind.astype(jnp.int32)[:, :, None], axis=1)
    pred = pred.reshape(n, C).astype(jnp.float32)                    # (n, 8)

    tgt = reg_3d.reshape(n, 8).astype(jnp.float32)
    ct = ct3d.reshape(n, 2).astype(jnp.float32)
    mask = reg_mask.reshape(n, 1).astype(jnp.float32)
    flip = flip_mask.reshape(n, 1).astype(jnp.float32)
    roty_f = roty.reshape(n, 1).astype(jnp.float32)

    # class-average dims looked up in the wrapper (3 f32 rows, no int tile)
    dims_avg = jnp.asarray(_DIMS_AVG, jnp.float32)
    cls_i = jnp.clip(cls_id.reshape(n).astype(jnp.int32), 0, 2)
    avg = dims_avg[cls_i]                                            # (n, 3) h,w,l

    # ---- fused per-image projection A = K_inv @ trans_inv (3x3), broadcast
    # per object along the lane axis.
    bottom = jnp.broadcast_to(jnp.array([[[0.0, 0.0, 1.0]]], jnp.float32),
                              (B, 1, 3))
    trans_sq = jnp.concatenate([trans.astype(jnp.float32), bottom], axis=1)
    trans_inv = jnp.linalg.inv(trans_sq)
    k_inv = jnp.linalg.inv(K[:, :, :3].astype(jnp.float32))
    fmat = jnp.matmul(k_inv, trans_inv).reshape(B, 9)
    fmat_obj = jnp.repeat(fmat, M, axis=0)                           # (n, 9)

    packed = jnp.concatenate(
        [pred, tgt, ct, mask, flip, roty_f, avg, fmat_obj], axis=1)  # (n, 33)

    # ---- flatten B*M onto lanes, pad to a multiple of 128 / the lane chunk
    n_pad = _round_up(max(n, 1), 128)
    if n_pad > _LANE_CHUNK:
        n_pad = _round_up(n_pad, _LANE_CHUNK)
        chunk = _LANE_CHUNK
    else:
        chunk = n_pad
    grid_n = n_pad // chunk

    if n_pad > n:
        # Padded lanes: all zeros except A[8]=1 (keeps the z-location away from
        # 0/0); with mask=0 their pred/gt decodes are bitwise identical, so
        # they contribute exactly 0 to every L1 term.
        pad_block = jnp.zeros((n_pad - n, _N_ROWS), jnp.float32)
        pad_block = pad_block.at[:, _R_FMAT + 8].set(1.0)
        packed = jnp.concatenate([packed, pad_block], axis=0)
    packed = jnp.pad(packed, ((0, 0), (0, _ROWS_PAD - _N_ROWS)))
    packed = packed.T                                                # (40, n_pad)

    partials = pl.pallas_call(
        _reg3d_loss_kernel,
        out_shape=jax.ShapeDtypeStruct((grid_n, 1), jnp.float32),
        grid=(grid_n,),
        in_specs=[pl.BlockSpec((_ROWS_PAD, chunk), lambda g: (0, g))],
        out_specs=pl.BlockSpec((1, 1), lambda g: (g, 0)),
        compiler_params=pltpu.CompilerParams(
            dimension_semantics=("parallel",)),
    )(packed)

    # loss_rotys + loss_dims + loss_locs, each L1-sum divided by (M * 10)
    loss = jnp.sum(partials) * (1.0 / (M * 10.0))

    # TODO(synk): giou_3D_loss relies on box3d_iou_loss (host-side numpy
    # polygon-clipping 3D IoU) which is not defined in the reference module;
    # returning 0.0 for the IoU branch.
    iouloss = jnp.float32(0.0)
    return loss, iouloss


if __name__ == "__main__":
    key = jax.random.PRNGKey(0)
    ks = jax.random.split(key, 8)
    B, C, H, W, M = 2, 8, 16, 16, 8   # C=8 regression channels (depth, ct2, dim3, ori2)

    output = 0.1 * jax.random.normal(ks[0], (B, C, H, W), jnp.float32)
    ind = jax.random.randint(ks[1], (B, M), 0, H * W, jnp.int32)
    cls_id = jax.random.randint(ks[2], (B, M), 0, 3, jnp.int32)
    reg_mask = (jax.random.uniform(ks[3], (B, M)) > 0.3).astype(jnp.float32)
    flip_mask = (jax.random.uniform(ks[4], (B, M)) > 0.5).astype(jnp.float32)
    ct3d = jax.random.uniform(ks[5], (B, M, 2), jnp.float32, 0.0, float(W))
    reg_3d = 0.1 * jax.random.normal(ks[6], (B, M, 8), jnp.float32)
    roty = jax.random.uniform(ks[7], (B, M), jnp.float32, -PI, PI)

    K_base = jnp.array([[721.54, 0.0, 609.56, 44.857],
                        [0.0, 721.54, 172.85, 0.2163],
                        [0.0, 0.0, 1.0, 0.00274]], jnp.float32)
    K = jnp.broadcast_to(K_base, (B, 3, 4))
    trans_base = jnp.array([[0.25, 0.0, 2.0],
                            [0.0, 0.25, 1.0]], jnp.float32)
    trans = jnp.broadcast_to(trans_base, (B, 2, 3))

    loss, iou = reg3d_loss_iou(output, ind, cls_id, reg_mask, flip_mask,
                               ct3d, reg_3d, roty, K, trans)
    jax.block_until_ready((loss, iou))
    print("KERNEL_OK")
</pallas_src>

<mosaic_0001>
module attributes {stable_mosaic.version = 11 : i64} {
  func.func @_reg3d_loss_kernel(%arg0: i32, %arg1: memref<40x128xf32, #tpu.memory_space<vmem>>, %arg2: memref<1x1xf32, #tpu.memory_space<vmem>>) attributes {dimension_semantics = [#tpu.dimension_semantics<parallel>], iteration_bounds = array<i64: 1>, scalar_prefetch = 0 : i64, scratch_operands = 0 : i64, tpu.core_type = #tpu.core_type<tc>, window_params = [{transform_indices = @transform_0, window_bounds = array<i64: 40, 128>}, {transform_indices = @transform_1, window_bounds = array<i64: 1, 1>}]} {
    %c18 = arith.constant 18 : index
    %c0 = arith.constant 0 : index
    %0 = vector.load %arg1[%c18, %c0] : memref<40x128xf32, #tpu.memory_space<vmem>>, vector<1x128xf32>
    %c0_0 = arith.constant 0 : index
    %c0_1 = arith.constant 0 : index
    %1 = vector.load %arg1[%c0_0, %c0_1] : memref<40x128xf32, #tpu.memory_space<vmem>>, vector<1x128xf32>
    %2 = arith.mulf %1, %0 : vector<1x128xf32>
    %c1 = arith.constant 1 : index
    %c0_2 = arith.constant 0 : index
    %3 = vector.load %arg1[%c1, %c0_2] : memref<40x128xf32, #tpu.memory_space<vmem>>, vector<1x128xf32>
    %4 = arith.mulf %3, %0 : vector<1x128xf32>
    %c2 = arith.constant 2 : index
    %c0_3 = arith.constant 0 : index
    %5 = vector.load %arg1[%c2, %c0_3] : memref<40x128xf32, #tpu.memory_space<vmem>>, vector<1x128xf32>
    %6 = arith.mulf %5, %0 : vector<1x128xf32>
    %c3 = arith.constant 3 : index
    %c0_4 = arith.constant 0 : index
    %7 = vector.load %arg1[%c3, %c0_4] : memref<40x128xf32, #tpu.memory_space<vmem>>, vector<1x128xf32>
    %8 = arith.mulf %7, %0 : vector<1x128xf32>
    %c4 = arith.constant 4 : index
    %c0_5 = arith.constant 0 : index
    %9 = vector.load %arg1[%c4, %c0_5] : memref<40x128xf32, #tpu.memory_space<vmem>>, vector<1x128xf32>
    %10 = arith.mulf %9, %0 : vector<1x128xf32>
    %c5 = arith.constant 5 : index
    %c0_6 = arith.constant 0 : index
    %11 = vector.load %arg1[%c5, %c0_6] : memref<40x128xf32, #tpu.memory_space<vmem>>, vector<1x128xf32>
    %12 = arith.mulf %11, %0 : vector<1x128xf32>
    %c6 = arith.constant 6 : index
    %c0_7 = arith.constant 0 : index
    %13 = vector.load %arg1[%c6, %c0_7] : memref<40x128xf32, #tpu.memory_space<vmem>>, vector<1x128xf32>
    %14 = arith.mulf %13, %0 : vector<1x128xf32>
    %c7 = arith.constant 7 : index
    %c0_8 = arith.constant 0 : index
    %15 = vector.load %arg1[%c7, %c0_8] : memref<40x128xf32, #tpu.memory_space<vmem>>, vector<1x128xf32>
    %16 = arith.mulf %15, %0 : vector<1x128xf32>
    %c8 = arith.constant 8 : index
    %c0_9 = arith.constant 0 : index
    %17 = vector.load %arg1[%c8, %c0_9] : memref<40x128xf32, #tpu.memory_space<vmem>>, vector<1x128xf32>
    %18 = arith.mulf %17, %0 : vector<1x128xf32>
    %c9 = arith.constant 9 : index
    %c0_10 = arith.constant 0 : index
    %19 = vector.load %arg1[%c9, %c0_10] : memref<40x128xf32, #tpu.memory_space<vmem>>, vector<1x128xf32>
    %20 = arith.mulf %19, %0 : vector<1x128xf32>
    %c10 = arith.constant 10 : index
    %c0_11 = arith.constant 0 : index
    %21 = vector.load %arg1[%c10, %c0_11] : memref<40x128xf32, #tpu.memory_space<vmem>>, vector<1x128xf32>
    %22 = arith.mulf %21, %0 : vector<1x128xf32>
    %c11 = arith.constant 11 : index
    %c0_12 = arith.constant 0 : index
    %23 = vector.load %arg1[%c11, %c0_12] : memref<40x128xf32, #tpu.memory_space<vmem>>, vector<1x128xf32>
    %24 = arith.mulf %23, %0 : vector<1x128xf32>
    %c12 = arith.constant 12 : index
    %c0_13 = arith.constant 0 : index
    %25 = vector.load %arg1[%c12, %c0_13] : memref<40x128xf32, #tpu.memory_space<vmem>>, vector<1x128xf32>
    %26 = arith.mulf %25, %0 : vector<1x128xf32>
    %c13 = arith.constant 13 : index
    %c0_14 = arith.constant 0 : index
    %27 = vector.load %arg1[%c13, %c0_14] : memref<40x128xf32, #tpu.memory_space<vmem>>, vector<1x128xf32>
    %28 = arith.mulf %27, %0 : vector<1x128xf32>
    %c16 = arith.constant 16 : index
    %c0_15 = arith.constant 0 : index
    %29 = vector.load %arg1[%c16, %c0_15] : memref<40x128xf32, #tpu.memory_space<vmem>>, vector<1x128xf32>
    %c17 = arith.constant 17 : index
    %c0_16 = arith.constant 0 : index
    %30 = vector.load %arg1[%c17, %c0_16] : memref<40x128xf32, #tpu.memory_space<vmem>>, vector<1x128xf32>
    %c19 = arith.constant 19 : index
    %c0_17 = arith.constant 0 : index
    %31 = vector.load %arg1[%c19, %c0_17] : memref<40x128xf32, #tpu.memory_space<vmem>>, vector<1x128xf32>
    %c20 = arith.constant 20 : index
    %c0_18 = arith.constant 0 : index
    %32 = vector.load %arg1[%c20, %c0_18] : memref<40x128xf32, #tpu.memory_space<vmem>>, vector<1x128xf32>
    %c21 = arith.constant 21 : index
    %c0_19 = arith.constant 0 : index
    %33 = vector.load %arg1[%c21, %c0_19] : memref<40x128xf32, #tpu.memory_space<vmem>>, vector<1x128xf32>
    %c22 = arith.constant 22 : index
    %c0_20 = arith.constant 0 : index
    %34 = vector.load %arg1[%c22, %c0_20] : memref<40x128xf32, #tpu.memory_space<vmem>>, vector<1x128xf32>
    %c23 = arith.constant 23 : index
    %c0_21 = arith.constant 0 : index
    %35 = vector.load %arg1[%c23, %c0_21] : memref<40x128xf32, #tpu.memory_space<vmem>>, vector<1x128xf32>
    %c24 = arith.constant 24 : index
    %c0_22 = arith.constant 0 : index
    %36 = vector.load %arg1[%c24, %c0_22] : memref<40x128xf32, #tpu.memory_space<vmem>>, vector<1x128xf32>
    %c25 = arith.constant 25 : index
    %c0_23 = arith.constant 0 : index
    %37 = vector.load %arg1[%c25, %c0_23] : memref<40x128xf32, #tpu.memory_space<vmem>>, vector<1x128xf32>
    %c26 = arith.constant 26 : index
    %c0_24 = arith.constant 0 : index
    %38 = vector.load %arg1[%c26, %c0_24] : memref<40x128xf32, #tpu.memory_space<vmem>>, vector<1x128xf32>
    %c27 = arith.constant 27 : index
    %c0_25 = arith.constant 0 : index
    %39 = vector.load %arg1[%c27, %c0_25] : memref<40x128xf32, #tpu.memory_space<vmem>>, vector<1x128xf32>
    %c28 = arith.constant 28 : index
    %c0_26 = arith.constant 0 : index
    %40 = vector.load %arg1[%c28, %c0_26] : memref<40x128xf32, #tpu.memory_space<vmem>>, vector<1x128xf32>
    %c29 = arith.constant 29 : index
    %c0_27 = arith.constant 0 : index
    %41 = vector.load %arg1[%c29, %c0_27] : memref<40x128xf32, #tpu.memory_space<vmem>>, vector<1x128xf32>
    %c30 = arith.constant 30 : index
    %c0_28 = arith.constant 0 : index
    %42 = vector.load %arg1[%c30, %c0_28] : memref<40x128xf32, #tpu.memory_space<vmem>>, vector<1x128xf32>
    %c31 = arith.constant 31 : index
    %c0_29 = arith.constant 0 : index
    %43 = vector.load %arg1[%c31, %c0_29] : memref<40x128xf32, #tpu.memory_space<vmem>>, vector<1x128xf32>
    %c32 = arith.constant 32 : index
    %c0_30 = arith.constant 0 : index
    %44 = vector.load %arg1[%c32, %c0_30] : memref<40x128xf32, #tpu.memory_space<vmem>>, vector<1x128xf32>
    %cst = arith.constant 1.632000e+01 : f32
    %45 = vector.broadcast %cst : f32 to vector<1x128xf32>
    %46 = arith.mulf %2, %45 : vector<1x128xf32>
    %cst_31 = arith.constant 2.801000e+01 : f32
    %47 = vector.broadcast %cst_31 : f32 to vector<1x128xf32>
    %48 = arith.addf %46, %47 : vector<1x128xf32>
    %cst_32 = arith.constant 1.632000e+01 : f32
    %49 = vector.broadcast %cst_32 : f32 to vector<1x128xf32>
    %50 = arith.mulf %18, %49 : vector<1x128xf32>
    %cst_33 = arith.constant 2.801000e+01 : f32
    %51 = vector.broadcast %cst_33 : f32 to vector<1x128xf32>
    %52 = arith.addf %50, %51 : vector<1x128xf32>
    %53 = arith.addf %29, %4 : vector<1x128xf32>
    %54 = arith.addf %30, %6 : vector<1x128xf32>
    %55 = arith.mulf %36, %53 : vector<1x128xf32>
    %56 = arith.mulf %37, %54 : vector<1x128xf32>
    %57 = arith.addf %55, %56 : vector<1x128xf32>
    %58 = arith.addf %57, %38 : vector<1x128xf32>
    %59 = arith.mulf %58, %48 : vector<1x128xf32>
    %60 = arith.mulf %39, %53 : vector<1x128xf32>
    %61 = arith.mulf %40, %54 : vector<1x128xf32>
    %62 = arith.addf %60, %61 : vector<1x128xf32>
    %63 = arith.addf %62, %41 : vector<1x128xf32>
    %64 = arith.mulf %63, %48 : vector<1x128xf32>
    %65 = arith.mulf %42, %53 : vector<1x128xf32>
    %66 = arith.mulf %43, %54 : vector<1x128xf32>
    %67 = arith.addf %65, %66 : vector<1x128xf32>
    %68 = arith.addf %67, %44 : vector<1x128xf32>
    %69 = arith.mulf %68, %48 : vector<1x128xf32>
    %70 = arith.addf %29, %20 : vector<1x128xf32>
    %71 = arith.addf %30, %22 : vector<1x128xf32>
    %72 = arith.mulf %36, %70 : vector<1x128xf32>
    %73 = arith.mulf %37, %71 : vector<1x128xf32>
    %74 = arith.addf %72, %73 : vector<1x128xf32>
    %75 = arith.addf %74, %38 : vector<1x128xf32>
    %76 = arith.mulf %75, %52 : vector<1x128xf32>
    %77 = arith.mulf %39, %70 : vector<1x128xf32>
    %78 = arith.mulf %40, %71 : vector<1x128xf32>
    %79 = arith.addf %77, %78 : vector<1x128xf32>
    %80 = arith.addf %79, %41 : vector<1x128xf32>
    %81 = arith.mulf %80, %52 : vector<1x128xf32>
    %82 = arith.mulf %42, %70 : vector<1x128xf32>
    %83 = arith.mulf %43, %71 : vector<1x128xf32>
    %84 = arith.addf %82, %83 : vector<1x128xf32>
    %85 = arith.addf %84, %44 : vector<1x128xf32>
    %86 = arith.mulf %85, %52 : vector<1x128xf32>
    %87 = math.exp %8 : vector<1x128xf32>
    %88 = arith.mulf %87, %33 : vector<1x128xf32>
    %89 = math.exp %10 : vector<1x128xf32>
    %90 = arith.mulf %89, %34 : vector<1x128xf32>
    %91 = math.exp %12 : vector<1x128xf32>
    %92 = arith.mulf %91, %35 : vector<1x128xf32>
    %93 = math.exp %24 : vector<1x128xf32>
    %94 = arith.mulf %93, %33 : vector<1x128xf32>
    %95 = math.exp %26 : vector<1x128xf32>
    %96 = arith.mulf %95, %34 : vector<1x128xf32>
    %97 = math.exp %28 : vector<1x128xf32>
    %98 = arith.mulf %97, %35 : vector<1x128xf32>
    %cst_34 = arith.constant 5.000000e-01 : f32
    %99 = vector.broadcast %cst_34 : f32 to vector<1x128xf32>
    %100 = arith.mulf %99, %88 : vector<1x128xf32>
    %101 = arith.addf %64, %100 : vector<1x128xf32>
    %cst_35 = arith.constant 5.000000e-01 : f32
    %102 = vector.broadcast %cst_35 : f32 to vector<1x128xf32>
    %103 = arith.mulf %102, %94 : vector<1x128xf32>
    %104 = arith.addf %81, %103 : vector<1x128xf32>
    %105 = arith.divf %76, %86 : vector<1x128xf32>
    %cst_36 = arith.constant 1.000000e-07 : f32
    %106 = vector.broadcast %cst_36 : f32 to vector<1x128xf32>
    %107 = arith.addf %105, %106 : vector<1x128xf32>
    %108 = math.absf %107 : vector<1x128xf32>
    %cst_37 = arith.constant 2.41421366 : f32
    %109 = vector.broadcast %cst_37 : f32 to vector<1x128xf32>
    %110 = arith.cmpf ogt, %108, %109 : vector<1x128xf32>
    %cst_38 = arith.constant 0.414213568 : f32
    %111 = vector.broadcast %cst_38 : f32 to vector<1x128xf32>
    %112 = arith.cmpf ogt, %108, %111 : vector<1x128xf32>
    %cst_39 = arith.constant -1.000000e+00 : f32
    %113 = vector.broadcast %cst_39 : f32 to vector<1x128xf32>
    %114 = arith.divf %113, %108 : vector<1x128xf32>
    %cst_40 = arith.constant 1.000000e+00 : f32
    %115 = vector.broadcast %cst_40 : f32 to vector<1x128xf32>
    %116 = arith.subf %108, %115 : vector<1x128xf32>
    %cst_41 = arith.constant 1.000000e+00 : f32
    %117 = vector.broadcast %cst_41 : f32 to vector<1x128xf32>
    %118 = arith.addf %108, %117 : vector<1x128xf32>
    %119 = arith.divf %116, %118 : vector<1x128xf32>
    %120 = arith.select %112, %119, %108 : vector<1x128xi1>, vector<1x128xf32>
    %121 = arith.select %110, %114, %120 : vector<1x128xi1>, vector<1x128xf32>
    %cst_42 = arith.constant 0.785398185 : f32
    %cst_43 = arith.constant 0.000000e+00 : f32
    %122 = vector.broadcast %cst_42 : f32 to vector<1x128xf32>
    %123 = vector.broadcast %cst_43 : f32 to vector<1x128xf32>
    %124 = arith.select %112, %122, %123 : vector<1x128xi1>, vector<1x128xf32>
    %cst_44 = arith.constant 1.57079637 : f32
    %125 = vector.broadcast %cst_44 : f32 to vector<1x128xf32>
    %126 = arith.select %110, %125, %124 : vector<1x128xi1>, vector<1x128xf32>
    %127 = arith.mulf %121, %121 : vector<1x128xf32>
    %cst_45 = arith.constant 0.0805374458 : f32
    %128 = vector.broadcast %cst_45 : f32 to vector<1x128xf32>
    %129 = arith.mulf %128, %127 : vector<1x128xf32>
    %cst_46 = arith.constant 0.138776854 : f32
    %130 = vector.broadcast %cst_46 : f32 to vector<1x128xf32>
    %131 = arith.subf %129, %130 : vector<1x128xf32>
    %132 = arith.mulf %131, %127 : vector<1x128xf32>
    %cst_47 = arith.constant 0.199777111 : f32
    %133 = vector.broadcast %cst_47 : f32 to vector<1x128xf32>
    %134 = arith.addf %132, %133 : vector<1x128xf32>
    %135 = arith.mulf %134, %127 : vector<1x128xf32>
    %cst_48 = arith.constant 0.333329499 : f32
    %136 = vector.broadcast %cst_48 : f32 to vector<1x128xf32>
    %137 = arith.subf %135, %136 : vector<1x128xf32>
    %138 = arith.mulf %137, %127 : vector<1x128xf32>
    %139 = arith.mulf %138, %121 : vector<1x128xf32>
    %140 = arith.addf %139, %121 : vector<1x128xf32>
    %141 = arith.addf %126, %140 : vector<1x128xf32>
    %cst_49 = arith.constant 0.000000e+00 : f32
    %142 = vector.broadcast %cst_49 : f32 to vector<1x128xf32>
    %143 = arith.cmpf olt, %107, %142 : vector<1x128xf32>
    %cst_50 = arith.constant 0.000000e+00 : f32
    %144 = vector.broadcast %cst_50 : f32 to vector<1x128xf32>
    %145 = arith.subf %144, %141 : vector<1x128xf32>
    %146 = arith.select %143, %145, %141 : vector<1x128xi1>, vector<1x128xf32>
    %cst_51 = arith.constant 1.000000e-07 : f32
    %147 = vector.broadcast %cst_51 : f32 to vector<1x128xf32>
    %148 = arith.addf %16, %147 : vector<1x128xf32>
    %149 = arith.divf %14, %148 : vector<1x128xf32>
    %150 = math.absf %149 : vector<1x128xf32>
    %cst_52 = arith.constant 2.41421366 : f32
    %151 = vector.broadcast %cst_52 : f32 to vector<1x128xf32>
    %152 = arith.cmpf ogt, %150, %151 : vector<1x128xf32>
    %cst_53 = arith.constant 0.414213568 : f32
    %153 = vector.broadcast %cst_53 : f32 to vector<1x128xf32>
    %154 = arith.cmpf ogt, %150, %153 : vector<1x128xf32>
    %cst_54 = arith.constant -1.000000e+00 : f32
    %155 = vector.broadcast %cst_54 : f32 to vector<1x128xf32>
    %156 = arith.divf %155, %150 : vector<1x128xf32>
    %cst_55 = arith.constant 1.000000e+00 : f32
    %157 = vector.broadcast %cst_55 : f32 to vector<1x128xf32>
    %158 = arith.subf %150, %157 : vector<1x128xf32>
    %cst_56 = arith.constant 1.000000e+00 : f32
    %159 = vector.broadcast %cst_56 : f32 to vector<1x128xf32>
    %160 = arith.addf %150, %159 : vector<1x128xf32>
    %161 = arith.divf %158, %160 : vector<1x128xf32>
    %162 = arith.select %154, %161, %150 : vector<1x128xi1>, vector<1x128xf32>
    %163 = arith.select %152, %156, %162 : vector<1x128xi1>, vector<1x128xf32>
    %cst_57 = arith.constant 0.785398185 : f32
    %cst_58 = arith.constant 0.000000e+00 : f32
    %164 = vector.broadcast %cst_57 : f32 to vector<1x128xf32>
    %165 = vector.broadcast %cst_58 : f32 to vector<1x128xf32>
    %166 = arith.select %154, %164, %165 : vector<1x128xi1>, vector<1x128xf32>
    %cst_59 = arith.constant 1.57079637 : f32
    %167 = vector.broadcast %cst_59 : f32 to vector<1x128xf32>
    %168 = arith.select %152, %167, %166 : vector<1x128xi1>, vector<1x128xf32>
    %169 = arith.mulf %163, %163 : vector<1x128xf32>
    %cst_60 = arith.constant 0.0805374458 : f32
    %170 = vector.broadcast %cst_60 : f32 to vector<1x128xf32>
    %171 = arith.mulf %170, %169 : vector<1x128xf32>
    %cst_61 = arith.constant 0.138776854 : f32
    %172 = vector.broadcast %cst_61 : f32 to vector<1x128xf32>
    %173 = arith.subf %171, %172 : vector<1x128xf32>
    %174 = arith.mulf %173, %169 : vector<1x128xf32>
    %cst_62 = arith.constant 0.199777111 : f32
    %175 = vector.broadcast %cst_62 : f32 to vector<1x128xf32>
    %176 = arith.addf %174, %175 : vector<1x128xf32>
    %177 = arith.mulf %176, %169 : vector<1x128xf32>
    %cst_63 = arith.constant 0.333329499 : f32
    %178 = vector.broadcast %cst_63 : f32 to vector<1x128xf32>
    %179 = arith.subf %177, %178 : vector<1x128xf32>
    %180 = arith.mulf %179, %169 : vector<1x128xf32>
    %181 = arith.mulf %180, %163 : vector<1x128xf32>
    %182 = arith.addf %181, %163 : vector<1x128xf32>
    %183 = arith.addf %168, %182 : vector<1x128xf32>
    %cst_64 = arith.constant 0.000000e+00 : f32
    %184 = vector.broadcast %cst_64 : f32 to vector<1x128xf32>
    %185 = arith.cmpf olt, %149, %184 : vector<1x128xf32>
    %cst_65 = arith.constant 0.000000e+00 : f32
    %186 = vector.broadcast %cst_65 : f32 to vector<1x128xf32>
    %187 = arith.subf %186, %183 : vector<1x128xf32>
    %188 = arith.select %185, %187, %183 : vector<1x128xi1>, vector<1x128xf32>
    %cst_66 = arith.constant 0.000000e+00 : f32
    %189 = vector.broadcast %cst_66 : f32 to vector<1x128xf32>
    %190 = arith.cmpf oge, %16, %189 : vector<1x128xf32>
    %cst_67 = arith.constant 1.57079625 : f32
    %191 = vector.broadcast %cst_67 : f32 to vector<1x128xf32>
    %192 = arith.subf %188, %191 : vector<1x128xf32>
    %cst_68 = arith.constant 1.57079625 : f32
    %193 = vector.broadcast %cst_68 : f32 to vector<1x128xf32>
    %194 = arith.addf %188, %193 : vector<1x128xf32>
    %195 = arith.select %190, %192, %194 : vector<1x128xi1>, vector<1x128xf32>
    %196 = arith.addf %195, %146 : vector<1x128xf32>
    %cst_69 = arith.constant 3.1415925 : f32
    %197 = vector.broadcast %cst_69 : f32 to vector<1x128xf32>
    %198 = arith.cmpf ogt, %196, %197 : vector<1x128xf32>
    %cst_70 = arith.constant 6.283185 : f32
    %199 = vector.broadcast %cst_70 : f32 to vector<1x128xf32>
    %200 = arith.subf %196, %199 : vector<1x128xf32>
    %201 = arith.select %198, %200, %196 : vector<1x128xi1>, vector<1x128xf32>
    %cst_71 = arith.constant -3.1415925 : f32
    %202 = vector.broadcast %cst_71 : f32 to vector<1x128xf32>
    %203 = arith.cmpf olt, %201, %202 : vector<1x128xf32>
    %cst_72 = arith.constant 6.283185 : f32
    %204 = vector.broadcast %cst_72 : f32 to vector<1x128xf32>
    %205 = arith.addf %201, %204 : vector<1x128xf32>
    %206 = arith.select %203, %205, %201 : vector<1x128xi1>, vector<1x128xf32>
    %207 = arith.mulf %31, %206 : vector<1x128xf32>
    %cst_73 = arith.constant 0.000000e+00 : f32
    %208 = vector.broadcast %cst_73 : f32 to vector<1x128xf32>
    %209 = arith.cmpf ogt, %207, %208 : vector<1x128xf32>
    %cst_74 = arith.constant 3.1415925 : f32
    %210 = vector.broadcast %cst_74 : f32 to vector<1x128xf32>
    %211 = arith.subf %207, %210 : vector<1x128xf32>
    %cst_75 = arith.constant 0.000000e+00 : f32
    %212 = vector.broadcast %cst_75 : f32 to vector<1x128xf32>
    %213 = arith.cmpf olt, %207, %212 : vector<1x128xf32>
    %cst_76 = arith.constant 3.1415925 : f32
    %214 = vector.broadcast %cst_76 : f32 to vector<1x128xf32>
    %215 = arith.addf %207, %214 : vector<1x128xf32>
    %216 = arith.select %213, %215, %207 : vector<1x128xi1>, vector<1x128xf32>
    %217 = arith.select %209, %211, %216 : vector<1x128xi1>, vector<1x128xf32>
    %218 = arith.mulf %31, %217 : vector<1x128xf32>
    %cst_77 = arith.constant 1.000000e+00 : f32
    %219 = vector.broadcast %cst_77 : f32 to vector<1x128xf32>
    %220 = arith.subf %219, %31 : vector<1x128xf32>
    %221 = arith.mulf %220, %206 : vector<1x128xf32>
    %222 = arith.addf %218, %221 : vector<1x128xf32>
    %223 = arith.mulf %0, %222 : vector<1x128xf32>
    %224 = arith.mulf %0, %32 : vector<1x128xf32>
    %225 = math.cos %223 : vector<1x128xf32>
    %226 = math.sin %223 : vector<1x128xf32>
    %227 = math.cos %224 : vector<1x128xf32>
    %228 = math.sin %224 : vector<1x128xf32>
    %229 = arith.subf %225, %227 : vector<1x128xf32>
    %230 = arith.subf %226, %228 : vector<1x128xf32>
    %231 = arith.mulf %229, %98 : vector<1x128xf32>
    %232 = arith.mulf %230, %94 : vector<1x128xf32>
    %233 = arith.addf %231, %232 : vector<1x128xf32>
    %234 = math.absf %233 : vector<1x128xf32>
    %235 = arith.mulf %229, %98 : vector<1x128xf32>
    %236 = arith.mulf %230, %94 : vector<1x128xf32>
    %237 = arith.subf %235, %236 : vector<1x128xf32>
    %238 = math.absf %237 : vector<1x128xf32>
    %239 = arith.addf %234, %238 : vector<1x128xf32>
    %240 = arith.mulf %229, %94 : vector<1x128xf32>
    %241 = arith.mulf %230, %98 : vector<1x128xf32>
    %242 = arith.subf %240, %241 : vector<1x128xf32>
    %243 = math.absf %242 : vector<1x128xf32>
    %244 = arith.addf %239, %243 : vector<1x128xf32>
    %245 = arith.mulf %229, %94 : vector<1x128xf32>
    %246 = arith.mulf %230, %98 : vector<1x128xf32>
    %247 = arith.addf %245, %246 : vector<1x128xf32>
    %248 = math.absf %247 : vector<1x128xf32>
    %249 = arith.addf %244, %248 : vector<1x128xf32>
    %cst_78 = arith.constant 2.000000e+00 : f32
    %250 = vector.broadcast %cst_78 : f32 to vector<1x128xf32>
    %251 = arith.mulf %250, %249 : vector<1x128xf32>
    %252 = arith.subf %92, %98 : vector<1x128xf32>
    %253 = arith.subf %88, %94 : vector<1x128xf32>
    %254 = arith.subf %90, %96 : vector<1x128xf32>
    %255 = arith.mulf %227, %252 : vector<1x128xf32>
    %256 = arith.mulf %228, %253 : vector<1x128xf32>
    %257 = arith.addf %255, %256 : vector<1x128xf32>
    %258 = math.absf %257 : vector<1x128xf32>
    %259 = arith.mulf %227, %252 : vector<1x128xf32>
    %260 = arith.mulf %228, %253 : vector<1x128xf32>
    %261 = arith.subf %259, %260 : vector<1x128xf32>
    %262 = math.absf %261 : vector<1x128xf32>
    %263 = arith.addf %258, %262 : vector<1x128xf32>
    %264 = arith.mulf %227, %253 : vector<1x128xf32>
    %265 = arith.mulf %228, %252 : vector<1x128xf32>
    %266 = arith.subf %264, %265 : vector<1x128xf32>
    %267 = math.absf %266 : vector<1x128xf32>
    %268 = arith.addf %263, %267 : vector<1x128xf32>
    %269 = arith.mulf %227, %253 : vector<1x128xf32>
    %270 = arith.mulf %228, %252 : vector<1x128xf32>
    %271 = arith.addf %269, %270 : vector<1x128xf32>
    %272 = math.absf %271 : vector<1x128xf32>
    %273 = arith.addf %268, %272 : vector<1x128xf32>
    %cst_79 = arith.constant 2.000000e+00 : f32
    %274 = vector.broadcast %cst_79 : f32 to vector<1x128xf32>
    %275 = arith.mulf %274, %273 : vector<1x128xf32>
    %276 = arith.addf %251, %275 : vector<1x128xf32>
    %277 = math.absf %254 : vector<1x128xf32>
    %cst_80 = arith.constant 4.000000e+00 : f32
    %278 = vector.broadcast %cst_80 : f32 to vector<1x128xf32>
    %279 = arith.mulf %278, %277 : vector<1x128xf32>
    %280 = arith.addf %276, %279 : vector<1x128xf32>
    %281 = arith.subf %59, %76 : vector<1x128xf32>
    %282 = math.absf %281 : vector<1x128xf32>
    %283 = arith.subf %101, %104 : vector<1x128xf32>
    %284 = math.absf %283 : vector<1x128xf32>
    %285 = arith.addf %282, %284 : vector<1x128xf32>
    %286 = arith.subf %69, %86 : vector<1x128xf32>
    %287 = math.absf %286 : vector<1x128xf32>
    %288 = arith.addf %285, %287 : vector<1x128xf32>
    %cst_81 = arith.constant 8.000000e+00 : f32
    %289 = vector.broadcast %cst_81 : f32 to vector<1x128xf32>
    %290 = arith.mulf %289, %288 : vector<1x128xf32>
    %291 = arith.addf %280, %290 : vector<1x128xf32>
    %292 = vector.shape_cast %291 : vector<1x128xf32> to vector<1x1x128xf32>
    %cst_82 = arith.constant dense<0.000000e+00> : vector<1xf32>
    %293 = vector.multi_reduction <add>, %292, %cst_82 [1, 2] : vector<1x1x128xf32> to vector<1xf32>
    %294 = vector.shape_cast %293 : vector<1xf32> to vector<1x1x1xf32>
    %295 = vector.extract %294[0, 0, 0] : f32 from vector<1x1x1xf32>
    %296 = vector.broadcast %295 : f32 to vector<1x1xf32>
    %c0_83 = arith.constant 0 : index
    %c0_84 = arith.constant 0 : index
    %297 = vector.load %arg2[%c0_83, %c0_84] : memref<1x1xf32, #tpu.memory_space<vmem>>, vector<1x1xf32>
    tpu.vector_store %arg2[%c0_83, %c0_84], %296 {strides = array<i32>} : memref<1x1xf32, #tpu.memory_space<vmem>>, vector<1x1xf32>,
    return
  }
  func.func @transform_0(%arg0: i32) -> (i32, i32) {
    %c0_i32 = arith.constant 0 : i32
    %c0_i32_0 = arith.constant 0 : i32
    return %c0_i32, %arg0 : i32, i32
  }
  func.func @transform_1(%arg0: i32) -> (i32, i32) {
    %c0_i32 = arith.constant 0 : i32
    %c0_i32_0 = arith.constant 0 : i32
    return %arg0, %c0_i32 : i32, i32
  }
}

</mosaic_0001>

<llo_original>
// kernel: custom-call.24
$region0: #{custom-call.24}
  %s0 = inlined_call_operand.vmem [shape: f32[2,3,3], index: 0, kind: input, shape index: {}]
  %s1 = inlined_call_operand.vmem [shape: f32[2,3,3], index: 1, kind: output, shape index: {0}]
  %s2 = inlined_call_operand.hbm [shape: s32[2,3], index: 2, kind: output, shape index: {1}]
  %s3 = inlined_call_operand.vmem [shape: s32[2,3], index: 3, kind: output, shape index: {2}]
  %4 = xla_tuple %s1, %s2, %s3
  $region1: #{custom-call.24} parent=0
    #allocation0 [shape = 'u8[4096]{0}', space=vmem, size = 0x1000, scoped, tag = 'operand span for operand 0']
    #allocation1 [shape = 'u8[4096]{0}', space=vmem, size = 0x1000, scoped, tag = 'packed  for operand 0']
    #allocation2 [shape = 'u8[4096]{0}', space=vmem, size = 0x1000, scoped, tag = 'operand span for operand 1']
    #allocation3 [shape = 'u8[4096]{0}', space=vmem, size = 0x1000, scoped, tag = 'packed  for operand 1']
    #allocation4 [shape = 'u8[4096]{0}', space=vmem, size = 0x1000, scoped, tag = 'operand span for operand 2']
    #allocation5 [shape = 'u8[2048]{0}', space=vmem, size = 0x800, scoped, tag = 'packed  for operand 2']
    #allocation6 [shape = 's32[2]{0}', space=sflag, size = 0x8, scoped, tag = 'scoped memory for custom-call.24']
    #allocation7 [shape = 'u8[4096]{0}', space=vmem, size = 0x1000, scoped, tag = 'operand span for operand 3']
    #allocation8 [shape = 'u8[2048]{0}', space=vmem, size = 0x800, scoped, tag = 'packed  for operand 3']
    %5 = vsyncpa [#allocation6], 0
    %s6 = scalar_lea.sflag [#allocation6], 1
    %7 = vsyncpa %s6, 0
    loop: start=0, step=1, limit=4
    $region2: #{custom-call.24} parent=1 // loop_pre_header
      _
    $region3: #{custom-call.24} parent=1 // loop_header
      %s9 = sphi 0, %s13
      %p10 = scmp.ge.s32.totalorder %s9, 4
      %s21 = sphi 0, %s23
      %s24 = sphi 0, %s21
      %s25 = sphi 0, %s24
      %s41 = sphi 0, %s25
      %s49 = sphi 0, %s51
      %s52 = sphi 0, %s49
      %s53 = sphi 0, %s52
      %s69 = sphi 0, %s53
    $region4: #{custom-call.24} parent=1 // loop_header_branch
      %12 = sbr.rel (%p10) target = $region8
    $region5: #{custom-call.24} parent=1 // loop_body
      %s14 = ssub.s32 %s9, 1
      %s15 = ssub.s32 %s9, 2
      %s16 = sadd.s32 %s9, 1
      %s17 = sshrl.u32 %s9, 3
      %s18 = sshrl.u32 %s16, 3
      %s19 = ssub.s32 %s17, %s18
      %p20 = scmp.eq.s32.totalorder %s19, 0
      %s22 = sadd.s32 %s21, 1
      %s23 = scalar_select %p20, %s21, %s22
      %p26 = pneg %p20
      %p27 = scmp.eq.s32.totalorder %s9, 1
      %p28 = por %p26, %p27
      %p29 = scmp.ne.s32.totalorder %s21, %s24
      %p30 = scmp.eq.s32.totalorder %s9, 0
      %p31 = por %p29, %p30
      %p32 = scmp.ne.s32.totalorder %s21, %s24
      %p33 = scmp.eq.s32.totalorder %s14, 1
      %p34 = por %p32, %p33
      %p35 = scmp.ne.s32.totalorder %s24, %s25
      %p36 = scmp.eq.s32.totalorder %s14, 0
      %p37 = por %p35, %p36
      %p38 = scmp.ne.s32.totalorder %s24, %s25
      %p39 = scmp.eq.s32.totalorder %s15, 1
      %p40 = por %p38, %p39
      %p42 = scmp.ne.s32.totalorder %s25, %s41
      %p43 = scmp.eq.s32.totalorder %s15, 0
      %p44 = por %p42, %p43
      %s45 = sshrl.u32 %s9, 3
      %s46 = sshrl.u32 %s16, 3
      %s47 = ssub.s32 %s45, %s46
      %p48 = scmp.eq.s32.totalorder %s47, 0
      %s50 = sadd.s32 %s49, 1
      %s51 = scalar_select %p48, %s49, %s50
      %p54 = pneg %p48
      %p55 = scmp.eq.s32.totalorder %s9, 1
      %p56 = por %p54, %p55
      %p57 = scmp.ne.s32.totalorder %s49, %s52
      %p58 = scmp.eq.s32.totalorder %s9, 0
      %p59 = por %p57, %p58
      %p60 = scmp.ne.s32.totalorder %s49, %s52
      %p61 = scmp.eq.s32.totalorder %s14, 1
      %p62 = por %p60, %p61
      %p63 = scmp.ne.s32.totalorder %s52, %s53
      %p64 = scmp.eq.s32.totalorder %s14, 0
      %p65 = por %p63, %p64
      %p66 = scmp.ne.s32.totalorder %s52, %s53
      %p67 = scmp.eq.s32.totalorder %s15, 1
      %p68 = por %p66, %p67
      %p70 = scmp.ne.s32.totalorder %s53, %s69
      %p71 = scmp.eq.s32.totalorder %s15, 0
      %p72 = por %p70, %p71
      %p73 = scmp.le.s32.totalorder 1, %s9
      %p74 = scmp.lt.s32.totalorder %s9, 3
      %p75 = pnand %p73, %p74
      %p76 = pneg %p75
      // Predicated region
      $region9: #{custom-call.24} parent=5 // pred_check
        _
      $region10: #{custom-call.24} parent=5 // pred_check_branch
        %78 = sbr.rel (%p75) target = $region12
      $region11: #{custom-call.24} parent=5 // pred_region
        %s79 = ssub.s32 %s9, 1
      $region12: #{custom-call.24} parent=5 // pred_fallthru
        _
      %p80 = scmp.lt.s32.totalorder %s9, 2
      // Predicated region
      $region13: #{custom-call.24} parent=5 // pred_check
        %p81 = pneg %p80
      $region14: #{custom-call.24} parent=5 // pred_check_branch
        %83 = sbr.rel (%p81) target = $region16
      $region15: #{custom-call.24} parent=5 // pred_region
        %s84 = sand.u32 %s9, 1
        %s85 = sand.u32 %s9, 1
        %s86 = smul.addr %s85, 4
        %s87 = scalar_lea.vmem [#allocation1], %s86
        %s88 = smul.addr %s9, 4
        %s89 = scalar_lea.vmem %s0, %s88
        // Predicated region
        $region17: #{custom-call.24} parent=15 // pred_check
          _
        $region18: #{custom-call.24} parent=15 // pred_check_branch
          %91 = sbr.rel (0) target = $region20
        $region19: #{custom-call.24} parent=15 // pred_region
          // Predicated region
          $region21: #{custom-call.24} parent=19 // pred_check
            _
          $region22: #{custom-call.24} parent=19 // pred_check_branch
            %93 = sbr.rel target = $region24
          $region23: #{custom-call.24} parent=19 // pred_region
            // Predicated region
            $region36: #{custom-call.24} parent=23 // pred_check
              _
            $region37: #{custom-call.24} parent=23 // pred_check_branch
              %109 = sbr.rel (0) target = $region39
            $region38: #{custom-call.24} parent=23 // pred_region
              %s111 = ssub.s32 16, 1
              loop: start=0, step=1, limit=1
              $region40: #{custom-call.24} parent=38 // loop_pre_header
                _
              $region41: #{custom-call.24} parent=38 // loop_header
                %s113 = sphi 0, %s117
                %p114 = scmp.ge.s32.totalorder %s113, 1
                %s118 = sphi %s89, %s89
                %s119 = sphi %s87, %s87
              $region42: #{custom-call.24} parent=38 // loop_header_branch
                %116 = sbr.rel (%p114) target = $region46
              $region43: #{custom-call.24} parent=38 // loop_body
                %v120 = vld [vmem:[%s118] sm:%s111]
                %121 = vst [vmem:[%s119] sm:%s111] %v120
              $region44: #{custom-call.24} parent=38 // loop_footer
                %s117 = sadd.s32 1, %s113
              $region45: #{custom-call.24} parent=38 // loop_footer_branch
                %112 = sbr.rel target = $region41
              $region46: #{custom-call.24} parent=38 // loop_exit
                _
            $region39: #{custom-call.24} parent=23 // pred_fallthru
              _
          $region24: #{custom-call.24} parent=19 // pred_fallthru
            _
          // Predicated region
          $region25: #{custom-call.24} parent=19 // pred_check
            _
          $region26: #{custom-call.24} parent=19 // pred_check_branch
            %95 = sbr.rel (0) target = $region28
          $region27: #{custom-call.24} parent=19 // pred_region
            %s97 = ssub.s32 16, 1
            loop: start=0, step=1, limit=1
            $region29: #{custom-call.24} parent=27 // loop_pre_header
              _
            $region30: #{custom-call.24} parent=27 // loop_header
              %s99 = sphi 0, %s103
              %p100 = scmp.ge.s32.totalorder %s99, 1
              %s104 = sphi %s89, %s89
              %s105 = sphi %s87, %s87
            $region31: #{custom-call.24} parent=27 // loop_header_branch
              %102 = sbr.rel (%p100) target = $region35
            $region32: #{custom-call.24} parent=27 // loop_body
              %v106 = vld [vmem:[%s104] sm:%s97]
              %107 = vst [vmem:[%s105] sm:%s97] %v106
            $region33: #{custom-call.24} parent=27 // loop_footer
              %s103 = sadd.s32 1, %s99
            $region34: #{custom-call.24} parent=27 // loop_footer_branch
              %98 = sbr.rel target = $region30
            $region35: #{custom-call.24} parent=27 // loop_exit
              _
          $region28: #{custom-call.24} parent=19 // pred_fallthru
            _
        $region20: #{custom-call.24} parent=15 // pred_fallthru
          _
        %122 = vnop
      $region16: #{custom-call.24} parent=5 // pred_fallthru
        _
      %p123 = scmp.le.s32.totalorder 1, %s9
      %p124 = scmp.lt.s32.totalorder %s9, 3
      %p125 = pnand %p123, %p124
      %p126 = pneg %p125
      // Predicated region
      $region47: #{custom-call.24} parent=5 // pred_check
        _
      $region48: #{custom-call.24} parent=5 // pred_check_branch
        %128 = sbr.rel (%p125) target = $region50
      $region49: #{custom-call.24} parent=5 // pred_region
        #allocation9 [shape = 's32[3,128]{1,0}', space=vmem, size = 0x1000, scoped, tag = 'scratch for permutations']
        %s129 = ssub.s32 %s9, 1
        %s130 = sand.u32 %s14, 1
        %s131 = sand.u32 %s14, 1
        %s132 = smul.addr %s131, 4
        %s133 = scalar_lea.vmem [#allocation1], %s132
        %s134 = sand.u32 %s14, 1
        %s135 = sand.u32 %s14, 1
        %s136 = smul.addr %s135, 4
        %s137 = scalar_lea.vmem [#allocation1], %s136
        %s138 = sand.u32 %s14, 1
        %s139 = sand.u32 %s14, 1
        %s140 = smul.addr %s139, 4
        %s141 = scalar_lea.vmem [#allocation3], %s140
        %p142 = pneg %p37
        %p143 = pneg %p34
        %s144 = sand.u32 %s24, 1
        %s145 = scalar_lea.sflag [#allocation6], %s144
        %s146 = sand.u32 %s24, 1
        %s147 = smul.addr %s146, 2
        %s148 = scalar_lea.vmem [#allocation5], %s147
        %p149 = pneg %p65
        %p150 = pneg %p62
        %s151 = sand.u32 %s52, 1
        %s152 = sand.u32 %s52, 1
        %s153 = smul.addr %s152, 2
        %s154 = scalar_lea.vmem [#allocation8], %s153
        %s156 = sshll.u32 1, 4
        %s157 = ssub.s32 %s156, 1
        %v158 = vld [vmem:[%s137] sm:%s157]
        %159 = vst [vmem:[#allocation0] sm:%s157] %v158
        %s160 = sshrl.u32 %s14, 3
        %s161 = sshrl.u32 %s14, 3
        %v162 = vld [vmem:[#allocation0] sm:$0xff]
        %163 = vst [vmem:[#allocation2] sm:$0xff] %v162
        %s164 = sand.u32 %s14, 7
        %s165 = scalar_lea.vmem [#allocation4], %s164
        %s166 = sand.u32 %s14, 7
        %s167 = scalar_lea.vmem [#allocation7], %s166
        %168 = vst [vmem:[%s165] sm:$0x1] 0
        %v169 = vlaneseq
        %v170 = vshrl.u32 %v169, 7
        %v171 = vmov %v170
        %173 = vst [vmem:[#allocation9] sm:$0xff] %v171
        loop: start=0, step=1, limit=3
        $region52: #{custom-call.24} parent=49 // loop_pre_header
          _
        $region53: #{custom-call.24} parent=49 // loop_header
          %s175 = sphi 0, %s179
          %p176 = scmp.ge.s32.totalorder %s175, 3
        $region54: #{custom-call.24} parent=49 // loop_header_branch
          %178 = sbr.rel (%p176) target = $region58
        $region55: #{custom-call.24} parent=49 // loop_body
          %v180 = vstv %s175
          %v181 = vlaneseq
          %v182 = vshrl.u32 %v181, 7
          %v183 = vmov %v182
          %v184 = vld [vmem:[#allocation2] sm:$0xff]
          %v185 = vand.u32 2147483647, %v184
          %v187 = vstv %s175
          %vm188 = vcmp.ge.s32.totalorder %v183, %v187
          %vm189 = vcmp.lt.s32.totalorder %v183, 3
          %vm190 = vmand %vm188, %vm189
          %vm191 = vcmp.lt.f32.partialorder -inf, %v185
          %vm192 = vmand %vm190, %vm191
          %v193 = vsel %vm192, %v183, %v180
          %v194 = vsel %vm192, %v185, -inf
          %v195 = vrot.slane %v194, 1
          %v196 = vrot.slane %v193, 1
          %vm197 = vcmp.ge.f32.partialorder %v195, %v194
          %v198 = vsel %vm197, %v195, %v194
          %v199 = vsel %vm197, %v196, %v193
          %v200 = vrot.slane %v195, 1
          %v201 = vrot.slane %v196, 1
          %vm202 = vcmp.ge.f32.partialorder %v200, %v198
          %v203 = vsel %vm202, %v200, %v198
          %v204 = vsel %vm202, %v201, %v199
          %v205 = vrot.slane %v200, 1
          %v206 = vrot.slane %v201, 1
          %vm207 = vcmp.ge.f32.partialorder %v205, %v203
          %v208 = vsel %vm207, %v205, %v203
          %v209 = vsel %vm207, %v206, %v204
          %v210 = vrot.slane %v205, 1
          %v211 = vrot.slane %v206, 1
          %vm212 = vcmp.ge.f32.partialorder %v210, %v208
          %v213 = vsel %vm212, %v210, %v208
          %v214 = vsel %vm212, %v211, %v209
          %v215 = vrot.slane %v210, 1
          %v216 = vrot.slane %v211, 1
          %vm217 = vcmp.ge.f32.partialorder %v215, %v213
          %v218 = vsel %vm217, %v215, %v213
          %v219 = vsel %vm217, %v216, %v214
          %v220 = vrot.slane %v215, 1
          %v221 = vrot.slane %v216, 1
          %vm222 = vcmp.ge.f32.partialorder %v220, %v218
          %v223 = vsel %vm222, %v220, %v218
          %v224 = vsel %vm222, %v221, %v219
          %v225 = vrot.slane %v220, 1
          %v226 = vrot.slane %v221, 1
          %vm227 = vcmp.ge.f32.partialorder %v225, %v223
          %v228 = vsel %vm227, %v225, %v223
          %v229 = vsel %vm227, %v226, %v224
          %s230 = ssub.s32 128, %s175
          %231 = vrot.lane.b32.xlu0 %v229, %s230
          %v232 = vpop.permute.xlu0 %231
          %s233 = vtos %v232
          %v234 = vstv %s175
          %v235 = vlaneseq
          %v236 = vand.u32 %v235, 127
          %vm237 = vcmp.eq.s32.totalorder %v236, %v234
          %v238 = vstv %s233
          %v239 = vld [vmem:[%s165] ss:$0 sm:$0xff]
          %v240 = vsel %vm237, %v238, %v239
          %241 = vst [vmem:[%s165] sm:$0x1] %v240
          %s242 = scalar_lea.vmem [#allocation2], %s175
          %s243 = scalar_lea.vmem [#allocation2], %s233
          %v244 = vld [vmem:[%s242] ss:$0 sm:$0xff]
          %v245 = vld [vmem:[%s243] ss:$0 sm:$0xff]
          %246 = vst [vmem:[%s243] sm:$0x1] %v244
          %247 = vst [vmem:[%s242] sm:$0x1] %v245
          %s248 = scalar_lea.vmem [#allocation9], %s175
          %s249 = scalar_lea.vmem [#allocation9], %s233
          %v250 = vld [vmem:[%s248] ss:$0 sm:$0xff]
          %v251 = vld [vmem:[%s249] ss:$0 sm:$0xff]
          %252 = vst [vmem:[%s249] sm:$0x1] %v250
          %253 = vst [vmem:[%s248] sm:$0x1] %v251
          %vm254 = vcmp.ne.f32.partialorder %v245, 0.0
          %vm255 = vmand %vm237, %vm254
          %v256 = vsel %vm255, %v245, 1.0
          %v257 = vlaneseq
          %v258 = vand.u32 %v257, 127
          %v259 = vstv %s175
          %vm260 = vcmp.gt.s32.totalorder %v258, %v259
          %v261 = vsel %vm260, %v245, 0.0
          %v262 = vlaneseq
          %v263 = vshrl.u32 %v262, 7
          %v264 = vmov %v263
          %v265 = vld [vmem:[#allocation2] sm:$0xff]
          %v267 = vstv %s175
          %vm268 = vcmp.gt.s32.totalorder %v264, %v267
          %v269 = vsel %vm268, %v256, 1.0
          %v270 = vrcp.pop %v269
          %v271 = vmul.f32 %v265, %v270
          %vm272 = vmand %vm268, %vm237
          %v273 = vsel %vm272, %v271, 0.0
          %274 = vadd.xlane.f32.xlu0 %v273
          %v275 = vpop.xlane.xlu0 %274
          %v276 = vmul.f32 %v275, %v261
          %v277 = vsub.f32 %v271, %v276
          %278 = vst [vmem:[#allocation2] sm:$0xff] %v277
        $region56: #{custom-call.24} parent=49 // loop_footer
          %s179 = sadd.s32 1, %s175
        $region57: #{custom-call.24} parent=49 // loop_footer_branch
          %174 = sbr.rel target = $region53
        $region58: #{custom-call.24} parent=49 // loop_exit
          _
        %v279 = vld [vmem:[#allocation9] sm:$0xff]
        %s280 = scalar_lea.vmem [#allocation9], 8
        %s281 = scalar_lea.vmem [#allocation9], 16
        %s282 = scalar_lea.vmem [#allocation9], 24
        %s283 = scalar_lea.vmem [#allocation9], 32
        %s284 = scalar_lea.vmem [#allocation9], 40
        %s285 = scalar_lea.vmem [#allocation9], 48
        %s286 = scalar_lea.vmem [#allocation9], 56
        %s287 = scalar_lea.vmem [#allocation9], 64
        %s288 = scalar_lea.vmem [#allocation9], 72
        %s289 = scalar_lea.vmem [#allocation9], 80
        %s290 = scalar_lea.vmem [#allocation9], 88
        %s291 = scalar_lea.vmem [#allocation9], 96
        %s292 = scalar_lea.vmem [#allocation9], 104
        %s293 = scalar_lea.vmem [#allocation9], 112
        %s294 = scalar_lea.vmem [#allocation9], 120
        %295 = vxpose.xlu0.b32.start [1/16] %v279, 128
        %296 = vxpose.xlu0.b32.cont [2/16] 0, 128
        %297 = vxpose.xlu0.b32.cont [3/16] 0, 128
        %298 = vxpose.xlu0.b32.cont [4/16] 0, 128
        %299 = vxpose.xlu0.b32.cont [5/16] 0, 128
        %300 = vxpose.xlu0.b32.cont [6/16] 0, 128
        %301 = vxpose.xlu0.b32.cont [7/16] 0, 128
        %302 = vxpose.xlu0.b32.cont [8/16] 0, 128
        %303 = vxpose.xlu0.b32.cont [9/16] 0, 128
        %304 = vxpose.xlu0.b32.cont [10/16] 0, 128
        %305 = vxpose.xlu0.b32.cont [11/16] 0, 128
        %306 = vxpose.xlu0.b32.cont [12/16] 0, 128
        %307 = vxpose.xlu0.b32.cont [13/16] 0, 128
        %308 = vxpose.xlu0.b32.cont [14/16] 0, 128
        %309 = vxpose.xlu0.b32.cont [15/16] 0, 128
        %310 = vxpose.xlu0.b32.end [16/16] 0, 128
        %v311 = vpop.trf.xlu0
        %v312 = vpop.trf.xlu0
        %v313 = vpop.trf.xlu0
        %v314 = vpop.trf.xlu0
        %v315 = vpop.trf.xlu0
        %v316 = vpop.trf.xlu0
        %v317 = vpop.trf.xlu0
        %v318 = vpop.trf.xlu0
        %v319 = vpop.trf.xlu0
        %v320 = vpop.trf.xlu0
        %v321 = vpop.trf.xlu0
        %v322 = vpop.trf.xlu0
        %v323 = vpop.trf.xlu0
        %v324 = vpop.trf.xlu0
        %v325 = vpop.trf.xlu0
        %v326 = vpop.trf.xlu0
        %327 = vst [vmem:[%s167] sm:$0x1] %v311
        %s329 = sshll.u32 1, 4
        %s330 = ssub.s32 %s329, 1
        %v332 = vld [vmem:[#allocation2] sm:%s330]
        %s333 = sshll.u32 1, 4
        %s334 = ssub.s32 %s333, 1
        %335 = vst [vmem:[%s141] sm:%s334] %v332
        %s337 = sshll.u32 1, 2
        %s338 = ssub.s32 %s337, 1
        %v340 = vld [vmem:[#allocation4] sm:%s338]
        %s341 = sshll.u32 1, 2
        %s342 = ssub.s32 %s341, 1
        %343 = vst [vmem:[%s148] sm:%s342] %v340
        %s345 = sshll.u32 1, 2
        %s346 = ssub.s32 %s345, 1
        %v348 = vld [vmem:[#allocation7] sm:%s346]
        %s349 = sshll.u32 1, 2
        %s350 = ssub.s32 %s349, 1
        %351 = vst [vmem:[%s154] sm:%s350] %v348
        %s352 = sand.u32 %s14, 1
        %s353 = sand.u32 %s14, 1
        %s354 = smul.addr %s353, 4
        %s355 = scalar_lea.vmem [#allocation3], %s354
        %s356 = sand.u32 %s24, 1
        %s357 = scalar_lea.sflag [#allocation6], %s356
        %s358 = sand.u32 %s24, 1
        %s359 = smul.addr %s358, 2
        %s360 = scalar_lea.vmem [#allocation5], %s359
        %s361 = sand.u32 %s52, 1
        %s362 = sand.u32 %s52, 1
        %s363 = smul.addr %s362, 2
        %s364 = scalar_lea.vmem [#allocation8], %s363
        %s365 = smul.addr %s14, 4
        %s366 = scalar_lea.vmem %s1, %s365
        // Predicated region
        $region59: #{custom-call.24} parent=49 // pred_check
          _
        $region60: #{custom-call.24} parent=49 // pred_check_branch
          %368 = sbr.rel (0) target = $region62
        $region61: #{custom-call.24} parent=49 // pred_region
          // Predicated region
          $region63: #{custom-call.24} parent=61 // pred_check
            _
          $region64: #{custom-call.24} parent=61 // pred_check_branch
            %370 = sbr.rel target = $region66
          $region65: #{custom-call.24} parent=61 // pred_region
            // Predicated region
            $region78: #{custom-call.24} parent=65 // pred_check
              _
            $region79: #{custom-call.24} parent=65 // pred_check_branch
              %386 = sbr.rel (0) target = $region81
            $region80: #{custom-call.24} parent=65 // pred_region
              %s388 = ssub.s32 16, 1
              loop: start=0, step=1, limit=1
              $region82: #{custom-call.24} parent=80 // loop_pre_header
                _
              $region83: #{custom-call.24} parent=80 // loop_header
                %s390 = sphi 0, %s394
                %p391 = scmp.ge.s32.totalorder %s390, 1
                %s395 = sphi %s355, %s355
                %s396 = sphi %s366, %s366
              $region84: #{custom-call.24} parent=80 // loop_header_branch
                %393 = sbr.rel (%p391) target = $region88
              $region85: #{custom-call.24} parent=80 // loop_body
                %v397 = vld [vmem:[%s395] sm:%s388]
                %398 = vst [vmem:[%s396] sm:%s388] %v397
              $region86: #{custom-call.24} parent=80 // loop_footer
                %s394 = sadd.s32 1, %s390
              $region87: #{custom-call.24} parent=80 // loop_footer_branch
                %389 = sbr.rel target = $region83
              $region88: #{custom-call.24} parent=80 // loop_exit
                _
            $region81: #{custom-call.24} parent=65 // pred_fallthru
              _
          $region66: #{custom-call.24} parent=61 // pred_fallthru
            _
          // Predicated region
          $region67: #{custom-call.24} parent=61 // pred_check
            _
          $region68: #{custom-call.24} parent=61 // pred_check_branch
            %372 = sbr.rel (0) target = $region70
          $region69: #{custom-call.24} parent=61 // pred_region
            %s374 = ssub.s32 16, 1
            loop: start=0, step=1, limit=1
            $region71: #{custom-call.24} parent=69 // loop_pre_header
              _
            $region72: #{custom-call.24} parent=69 // loop_header
              %s376 = sphi 0, %s380
              %p377 = scmp.ge.s32.totalorder %s376, 1
              %s381 = sphi %s355, %s355
              %s382 = sphi %s366, %s366
            $region73: #{custom-call.24} parent=69 // loop_header_branch
              %379 = sbr.rel (%p377) target = $region77
            $region74: #{custom-call.24} parent=69 // loop_body
              %v383 = vld [vmem:[%s381] sm:%s374]
              %384 = vst [vmem:[%s382] sm:%s374] %v383
            $region75: #{custom-call.24} parent=69 // loop_footer
              %s380 = sadd.s32 1, %s376
            $region76: #{custom-call.24} parent=69 // loop_footer_branch
              %375 = sbr.rel target = $region72
            $region77: #{custom-call.24} parent=69 // loop_exit
              _
          $region70: #{custom-call.24} parent=61 // pred_fallthru
            _
        $region62: #{custom-call.24} parent=49 // pred_fallthru
          _
        %399 = vnop
        // Predicated region
        $region89: #{custom-call.24} parent=49 // pred_check
          %p400 = pneg %p34
        $region90: #{custom-call.24} parent=49 // pred_check_branch
          %402 = sbr.rel (%p400) target = $region92
        $region91: #{custom-call.24} parent=49 // pred_region
          %s403 = sshrl.u32 %s14, 3
          %s405 = ssub.s32 32, 32
          %406 = vsyncadd %s357, %s405
          %s407 = smul.addr %s403, 32
          %s408 = scalar_lea.hbm %s2, %s407
          %s410 = sshll.u32 %s360, 4
          %s411 = int_to_ptr.vmem [resolvable:$true] %s410
          %413 = dma.vmem_to_hbm [thread:$0]  %s411, 32, %s408, %s357
        $region92: #{custom-call.24} parent=49 // pred_fallthru
          _
        // Predicated region
        $region93: #{custom-call.24} parent=49 // pred_check
          %p414 = pneg %p62
        $region94: #{custom-call.24} parent=49 // pred_check_branch
          %416 = sbr.rel (%p414) target = $region96
        $region95: #{custom-call.24} parent=49 // pred_region
          %s417 = sshrl.u32 %s14, 3
          %s418 = smul.addr %s417, 2
          %s419 = scalar_lea.vmem %s3, %s418
          // Predicated region
          $region97: #{custom-call.24} parent=95 // pred_check
            _
          $region98: #{custom-call.24} parent=95 // pred_check_branch
            %421 = sbr.rel (0) target = $region100
          $region99: #{custom-call.24} parent=95 // pred_region
            // Predicated region
            $region101: #{custom-call.24} parent=99 // pred_check
              _
            $region102: #{custom-call.24} parent=99 // pred_check_branch
              %423 = sbr.rel target = $region104
            $region103: #{custom-call.24} parent=99 // pred_region
              // Predicated region
              $region116: #{custom-call.24} parent=103 // pred_check
                _
              $region117: #{custom-call.24} parent=103 // pred_check_branch
                %439 = sbr.rel (0) target = $region119
              $region118: #{custom-call.24} parent=103 // pred_region
                %s441 = ssub.s32 4, 1
                loop: start=0, step=1, limit=1
                $region120: #{custom-call.24} parent=118 // loop_pre_header
                  _
                $region121: #{custom-call.24} parent=118 // loop_header
                  %s443 = sphi 0, %s447
                  %p444 = scmp.ge.s32.totalorder %s443, 1
                  %s448 = sphi %s364, %s364
                  %s449 = sphi %s419, %s419
                $region122: #{custom-call.24} parent=118 // loop_header_branch
                  %446 = sbr.rel (%p444) target = $region126
                $region123: #{custom-call.24} parent=118 // loop_body
                  %v450 = vld [vmem:[%s448] sm:%s441]
                  %451 = vst [vmem:[%s449] sm:%s441] %v450
                $region124: #{custom-call.24} parent=118 // loop_footer
                  %s447 = sadd.s32 1, %s443
                $region125: #{custom-call.24} parent=118 // loop_footer_branch
                  %442 = sbr.rel target = $region121
                $region126: #{custom-call.24} parent=118 // loop_exit
                  _
              $region119: #{custom-call.24} parent=103 // pred_fallthru
                _
            $region104: #{custom-call.24} parent=99 // pred_fallthru
              _
            // Predicated region
            $region105: #{custom-call.24} parent=99 // pred_check
              _
            $region106: #{custom-call.24} parent=99 // pred_check_branch
              %425 = sbr.rel (0) target = $region108
            $region107: #{custom-call.24} parent=99 // pred_region
              %s427 = ssub.s32 4, 1
              loop: start=0, step=1, limit=1
              $region109: #{custom-call.24} parent=107 // loop_pre_header
                _
              $region110: #{custom-call.24} parent=107 // loop_header
                %s429 = sphi 0, %s433
                %p430 = scmp.ge.s32.totalorder %s429, 1
                %s434 = sphi %s364, %s364
                %s435 = sphi %s419, %s419
              $region111: #{custom-call.24} parent=107 // loop_header_branch
                %432 = sbr.rel (%p430) target = $region115
              $region112: #{custom-call.24} parent=107 // loop_body
                %v436 = vld [vmem:[%s434] sm:%s427]
                %437 = vst [vmem:[%s435] sm:%s427] %v436
              $region113: #{custom-call.24} parent=107 // loop_footer
                %s433 = sadd.s32 1, %s429
              $region114: #{custom-call.24} parent=107 // loop_footer_branch
                %428 = sbr.rel target = $region110
              $region115: #{custom-call.24} parent=107 // loop_exit
                _
            $region108: #{custom-call.24} parent=99 // pred_fallthru
              _
          $region100: #{custom-call.24} parent=95 // pred_fallthru
            _
          %452 = vnop
        $region96: #{custom-call.24} parent=49 // pred_fallthru
          _
      $region50: #{custom-call.24} parent=5 // pred_fallthru
        _
      %p453 = scmp.le.s32.totalorder 2, %s9
      // Predicated region
      $region127: #{custom-call.24} parent=5 // pred_check
        %p454 = pneg %p453
      $region128: #{custom-call.24} parent=5 // pred_check_branch
        %456 = sbr.rel (%p454) target = $region130
      $region129: #{custom-call.24} parent=5 // pred_region
        %s457 = ssub.s32 %s9, 2
        %s458 = sand.u32 %s15, 1
        %s459 = sand.u32 %s15, 1
        %s460 = smul.addr %s459, 4
        %s461 = scalar_lea.vmem [#allocation3], %s460
        // Predicated region
        $region131: #{custom-call.24} parent=129 // pred_check
          %p462 = pneg %p40
        $region132: #{custom-call.24} parent=129 // pred_check_branch
          %464 = sbr.rel (%p462) target = $region134
        $region133: #{custom-call.24} parent=129 // pred_region
          %s465 = sand.u32 %s25, 1
          %s466 = scalar_lea.sflag [#allocation6], %s465
          %s467 = sand.u32 %s25, 1
          %s468 = smul.addr %s467, 2
          %s469 = scalar_lea.vmem [#allocation5], %s468
          %470 = dma.done %s466, 32
        $region134: #{custom-call.24} parent=129 // pred_fallthru
          _
        // Predicated region
        $region135: #{custom-call.24} parent=129 // pred_check
          %p471 = pneg %p68
        $region136: #{custom-call.24} parent=129 // pred_check_branch
          %473 = sbr.rel (%p471) target = $region138
        $region137: #{custom-call.24} parent=129 // pred_region
          %s474 = sand.u32 %s53, 1
          %s475 = sand.u32 %s53, 1
          %s476 = smul.addr %s475, 2
          %s477 = scalar_lea.vmem [#allocation8], %s476
        $region138: #{custom-call.24} parent=129 // pred_fallthru
          _
      $region130: #{custom-call.24} parent=5 // pred_fallthru
        _
    $region6: #{custom-call.24} parent=1 // loop_footer
      %s13 = sadd.s32 1, %s9
    $region7: #{custom-call.24} parent=1 // loop_footer_branch
      %8 = sbr.rel target = $region3
    $region8: #{custom-call.24} parent=1 // loop_exit
      _
    %478 = vsyncpa [#allocation6], 1
    %s479 = scalar_lea.sflag [#allocation6], 1
    %480 = vsyncpa %s479, 1

// kernel: custom-call.26
$region0: #{custom-call.26}
  %s0 = inlined_call_operand.vmem [shape: f32[2,1,3,3], index: 0, kind: input, shape index: {}]
  %s1 = inlined_call_operand.vmem [shape: f32[2,1,3,3], index: 1, kind: output, shape index: {}]
  $region1: #{custom-call.26} parent=0
    #allocation0 [shape = 'u8[4096]{0}', space=vmem, size = 0x1000, scoped, tag = 'operand span for operand 0']
    #allocation1 [shape = 'u8[4096]{0}', space=vmem, size = 0x1000, scoped, tag = 'packed  for operand 0']
    #allocation2 [shape = 'u8[4096]{0}', space=vmem, size = 0x1000, scoped, tag = 'operand span for operand 1']
    #allocation3 [shape = 'u8[4096]{0}', space=vmem, size = 0x1000, scoped, tag = 'packed  for operand 1']
    loop: start=0, step=1, limit=4
    $region2: #{custom-call.26} parent=1 // loop_pre_header
      _
    $region3: #{custom-call.26} parent=1 // loop_header
      %s3 = sphi 0, %s7
      %p4 = scmp.ge.s32.totalorder %s3, 4
      %s10 = sphi 0, %s36
      %s11 = sphi 0, %s32
      %s12 = sphi 0, %s28
      %s13 = sphi 0, %s24
      %s14 = sphi 0, %s10
      %s15 = sphi 0, %s11
      %s16 = sphi 0, %s12
      %s17 = sphi 0, %s13
      %s18 = sphi 0, %s14
      %s19 = sphi 0, %s15
      %s20 = sphi 0, %s16
      %s21 = sphi 0, %s17
    $region4: #{custom-call.26} parent=1 // loop_header_branch
      %6 = sbr.rel (%p4) target = $region8
    $region5: #{custom-call.26} parent=1 // loop_body
      %s8 = ssub.s32 %s3, 1
      %s9 = ssub.s32 %s3, 2
      %s22 = sadd.s32 1, %s13
      %p23 = scmp.ge.s32.totalorder %s22, 1
      %s24 = scalar_select %p23, 0, %s22
      %s25 = sadd.s32 1, %s12
      %s26 = scalar_select %p23, %s25, %s12
      %p27 = scmp.ge.s32.totalorder %s26, 1
      %s28 = scalar_select %p27, 0, %s26
      %s29 = sadd.s32 1, %s11
      %s30 = scalar_select %p27, %s29, %s11
      %p31 = scmp.ge.s32.totalorder %s30, 1
      %s32 = scalar_select %p31, 0, %s30
      %s33 = sadd.s32 1, %s10
      %s34 = scalar_select %p31, %s33, %s10
      %p35 = scmp.ge.s32.totalorder %s34, 2
      %s36 = scalar_select %p35, 0, %s34
      %p37 = scmp.le.s32.totalorder 1, %s3
      %p38 = scmp.lt.s32.totalorder %s3, 3
      %p39 = pnand %p37, %p38
      %p40 = pneg %p39
      // Predicated region
      $region9: #{custom-call.26} parent=5 // pred_check
        _
      $region10: #{custom-call.26} parent=5 // pred_check_branch
        %42 = sbr.rel (%p39) target = $region12
      $region11: #{custom-call.26} parent=5 // pred_region
        %s43 = ssub.s32 %s3, 1
      $region12: #{custom-call.26} parent=5 // pred_fallthru
        _
      %p44 = scmp.lt.s32.totalorder %s3, 2
      // Predicated region
      $region13: #{custom-call.26} parent=5 // pred_check
        %p45 = pneg %p44
      $region14: #{custom-call.26} parent=5 // pred_check_branch
        %47 = sbr.rel (%p45) target = $region16
      $region15: #{custom-call.26} parent=5 // pred_region
        %s48 = sand.u32 %s3, 1
        %s49 = sand.u32 %s3, 1
        %s50 = smul.addr %s49, 4
        %s51 = scalar_lea.vmem [#allocation1], %s50
        %s52 = sadd.s32 %s13, %s12
        %s53 = sadd.s32 %s52, %s11
        %s54 = sadd.s32 %s53, %s10
        %s55 = smul.addr %s54, 4
        %s56 = scalar_lea.vmem %s0, %s55
        // Predicated region
        $region17: #{custom-call.26} parent=15 // pred_check
          _
        $region18: #{custom-call.26} parent=15 // pred_check_branch
          %58 = sbr.rel (0) target = $region20
        $region19: #{custom-call.26} parent=15 // pred_region
          // Predicated region
          $region21: #{custom-call.26} parent=19 // pred_check
            _
          $region22: #{custom-call.26} parent=19 // pred_check_branch
            %60 = sbr.rel target = $region24
          $region23: #{custom-call.26} parent=19 // pred_region
            // Predicated region
            $region36: #{custom-call.26} parent=23 // pred_check
              _
            $region37: #{custom-call.26} parent=23 // pred_check_branch
              %76 = sbr.rel (0) target = $region39
            $region38: #{custom-call.26} parent=23 // pred_region
              %s78 = ssub.s32 16, 1
              loop: start=0, step=1, limit=1
              $region40: #{custom-call.26} parent=38 // loop_pre_header
                _
              $region41: #{custom-call.26} parent=38 // loop_header
                %s80 = sphi 0, %s84
                %p81 = scmp.ge.s32.totalorder %s80, 1
                %s85 = sphi %s56, %s56
                %s86 = sphi %s51, %s51
              $region42: #{custom-call.26} parent=38 // loop_header_branch
                %83 = sbr.rel (%p81) target = $region46
              $region43: #{custom-call.26} parent=38 // loop_body
                %v87 = vld [vmem:[%s85] sm:%s78]
                %88 = vst [vmem:[%s86] sm:%s78] %v87
              $region44: #{custom-call.26} parent=38 // loop_footer
                %s84 = sadd.s32 1, %s80
              $region45: #{custom-call.26} parent=38 // loop_footer_branch
                %79 = sbr.rel target = $region41
              $region46: #{custom-call.26} parent=38 // loop_exit
                _
            $region39: #{custom-call.26} parent=23 // pred_fallthru
              _
          $region24: #{custom-call.26} parent=19 // pred_fallthru
            _
          // Predicated region
          $region25: #{custom-call.26} parent=19 // pred_check
            _
          $region26: #{custom-call.26} parent=19 // pred_check_branch
            %62 = sbr.rel (0) target = $region28
          $region27: #{custom-call.26} parent=19 // pred_region
            %s64 = ssub.s32 16, 1
            loop: start=0, step=1, limit=1
            $region29: #{custom-call.26} parent=27 // loop_pre_header
              _
            $region30: #{custom-call.26} parent=27 // loop_header
              %s66 = sphi 0, %s70
              %p67 = scmp.ge.s32.totalorder %s66, 1
              %s71 = sphi %s56, %s56
              %s72 = sphi %s51, %s51
            $region31: #{custom-call.26} parent=27 // loop_header_branch
              %69 = sbr.rel (%p67) target = $region35
            $region32: #{custom-call.26} parent=27 // loop_body
              %v73 = vld [vmem:[%s71] sm:%s64]
              %74 = vst [vmem:[%s72] sm:%s64] %v73
            $region33: #{custom-call.26} parent=27 // loop_footer
              %s70 = sadd.s32 1, %s66
            $region34: #{custom-call.26} parent=27 // loop_footer_branch
              %65 = sbr.rel target = $region30
            $region35: #{custom-call.26} parent=27 // loop_exit
              _
          $region28: #{custom-call.26} parent=19 // pred_fallthru
            _
        $region20: #{custom-call.26} parent=15 // pred_fallthru
          _
        %89 = vnop
      $region16: #{custom-call.26} parent=5 // pred_fallthru
        _
      %p90 = scmp.le.s32.totalorder 1, %s3
      %p91 = scmp.lt.s32.totalorder %s3, 3
      %p92 = pnand %p90, %p91
      %p93 = pneg %p92
      // Predicated region
      $region47: #{custom-call.26} parent=5 // pred_check
        _
      $region48: #{custom-call.26} parent=5 // pred_check_branch
        %95 = sbr.rel (%p92) target = $region50
      $region49: #{custom-call.26} parent=5 // pred_region
        #allocation4 [shape = 'f32[3,3]{1,0}', space=vmem, size = 0x1000, scoped, tag = 'rescaled input a']
        %s96 = ssub.s32 %s3, 1
        %s97 = sand.u32 %s8, 1
        %s98 = sand.u32 %s8, 1
        %s99 = smul.addr %s98, 4
        %s100 = scalar_lea.vmem [#allocation1], %s99
        %s101 = sand.u32 %s8, 1
        %s102 = sand.u32 %s8, 1
        %s103 = smul.addr %s102, 4
        %s104 = scalar_lea.vmem [#allocation1], %s103
        %s105 = sand.u32 %s8, 1
        %s106 = sand.u32 %s8, 1
        %s107 = smul.addr %s106, 4
        %s108 = scalar_lea.vmem [#allocation3], %s107
        %s110 = sshll.u32 1, 4
        %s111 = ssub.s32 %s110, 1
        %v112 = vld [vmem:[%s104] sm:%s111]
        %113 = vst [vmem:[#allocation0] sm:%s111] %v112
        %v114 = vlaneseq
        %v115 = vand.u32 %v114, 127
        %vm116 = vcmp.lt.s32.totalorder %v115, 3
        %v117 = vlaneseq
        %v118 = vshrl.u32 %v117, 7
        %vm120 = vcmp.eq.s32.totalorder %v118, %v115
        %v121 = vld [vmem:[#allocation0] sm:$0xff]
        %v122 = vsel %vm120, %v121, 0.0
        %123 = vadd.xlane.f32.xlu0 %v122
        %v124 = vpop.xlane.xlu0 %123
        %vm125 = vcmp.ge.s32.totalorder %v118, %v115
        %vm126 = vmand %vm125, %vm116
        %v127 = vsel %vm126, %v121, 0.0
        %v128 = vrcp.pop %v124
        %v129 = vmul.f32 %v127, %v128
        %130 = vst [vmem:[#allocation4] sm:$0xff] %v129
        %v131 = vlaneseq
        %v132 = vand.u32 %v131, 127
        %v133 = vlaneseq
        %v134 = vshrl.u32 %v133, 7
        %vm136 = vcmp.eq.s32.totalorder %v132, %v134
        %v137 = vlaneseq
        %v138 = vand.u32 %v137, 127
        %vm139 = vcmp.eq.s32.totalorder %v138, 0
        %v140 = vsel %vm139, 1.0, -1.0
        %v141 = vsel %vm136, %v140, 0.0
        %s142 = scalar_lea.vmem [#allocation4], 1
        %v143 = vld [vmem:[%s142] ss:$0 sm:$0xff]
        %v144 = vxor.u32 %v143, 2147483648
        %v145 = vlaneseq
        %v146 = vand.u32 %v145, 127
        %vm147 = vcmp.eq.s32.totalorder %v146, 1
        %v148 = vmul.f32 %v144, %v141
        %149 = vadd.xlane.f32.xlu0 %v148
        %v150 = vpop.xlane.xlu0 %149
        %v151 = vsel %vm147, %v150, %v141
        %s152 = scalar_lea.vmem [#allocation4], 2
        %v153 = vld [vmem:[%s152] ss:$0 sm:$0xff]
        %v154 = vxor.u32 %v153, 2147483648
        %v155 = vlaneseq
        %v156 = vand.u32 %v155, 127
        %vm157 = vcmp.eq.s32.totalorder %v156, 2
        %v158 = vmul.f32 %v154, %v151
        %159 = vadd.xlane.f32.xlu0 %v158
        %v160 = vpop.xlane.xlu0 %159
        %v161 = vsel %vm157, %v160, %v151
        %v162 = vrcp.pop %v124
        %v163 = vmul.f32 %v161, %v162
        %vm164 = vweird.f32 %v124
        %v165 = vsel %vm164, %v161, %v163
        %166 = vst [vmem:[#allocation2] sm:$0xff] %v165
        %s168 = sshll.u32 1, 4
        %s169 = ssub.s32 %s168, 1
        %v171 = vld [vmem:[#allocation2] sm:%s169]
        %s172 = sshll.u32 1, 4
        %s173 = ssub.s32 %s172, 1
        %174 = vst [vmem:[%s108] sm:%s173] %v171
        %s175 = sand.u32 %s8, 1
        %s176 = sand.u32 %s8, 1
        %s177 = smul.addr %s176, 4
        %s178 = scalar_lea.vmem [#allocation3], %s177
        %s179 = sadd.s32 %s17, %s16
        %s180 = sadd.s32 %s179, %s15
        %s181 = sadd.s32 %s180, %s14
        %s182 = smul.addr %s181, 4
        %s183 = scalar_lea.vmem %s1, %s182
        // Predicated region
        $region51: #{custom-call.26} parent=49 // pred_check
          _
        $region52: #{custom-call.26} parent=49 // pred_check_branch
          %185 = sbr.rel (0) target = $region54
        $region53: #{custom-call.26} parent=49 // pred_region
          // Predicated region
          $region55: #{custom-call.26} parent=53 // pred_check
            _
          $region56: #{custom-call.26} parent=53 // pred_check_branch
            %187 = sbr.rel target = $region58
          $region57: #{custom-call.26} parent=53 // pred_region
            // Predicated region
            $region70: #{custom-call.26} parent=57 // pred_check
              _
            $region71: #{custom-call.26} parent=57 // pred_check_branch
              %203 = sbr.rel (0) target = $region73
            $region72: #{custom-call.26} parent=57 // pred_region
              %s205 = ssub.s32 16, 1
              loop: start=0, step=1, limit=1
              $region74: #{custom-call.26} parent=72 // loop_pre_header
                _
              $region75: #{custom-call.26} parent=72 // loop_header
                %s207 = sphi 0, %s211
                %p208 = scmp.ge.s32.totalorder %s207, 1
                %s212 = sphi %s178, %s178
                %s213 = sphi %s183, %s183
              $region76: #{custom-call.26} parent=72 // loop_header_branch
                %210 = sbr.rel (%p208) target = $region80
              $region77: #{custom-call.26} parent=72 // loop_body
                %v214 = vld [vmem:[%s212] sm:%s205]
                %215 = vst [vmem:[%s213] sm:%s205] %v214
              $region78: #{custom-call.26} parent=72 // loop_footer
                %s211 = sadd.s32 1, %s207
              $region79: #{custom-call.26} parent=72 // loop_footer_branch
                %206 = sbr.rel target = $region75
              $region80: #{custom-call.26} parent=72 // loop_exit
                _
            $region73: #{custom-call.26} parent=57 // pred_fallthru
              _
          $region58: #{custom-call.26} parent=53 // pred_fallthru
            _
          // Predicated region
          $region59: #{custom-call.26} parent=53 // pred_check
            _
          $region60: #{custom-call.26} parent=53 // pred_check_branch
            %189 = sbr.rel (0) target = $region62
          $region61: #{custom-call.26} parent=53 // pred_region
            %s191 = ssub.s32 16, 1
            loop: start=0, step=1, limit=1
            $region63: #{custom-call.26} parent=61 // loop_pre_header
              _
            $region64: #{custom-call.26} parent=61 // loop_header
              %s193 = sphi 0, %s197
              %p194 = scmp.ge.s32.totalorder %s193, 1
              %s198 = sphi %s178, %s178
              %s199 = sphi %s183, %s183
            $region65: #{custom-call.26} parent=61 // loop_header_branch
              %196 = sbr.rel (%p194) target = $region69
            $region66: #{custom-call.26} parent=61 // loop_body
              %v200 = vld [vmem:[%s198] sm:%s191]
              %201 = vst [vmem:[%s199] sm:%s191] %v200
            $region67: #{custom-call.26} parent=61 // loop_footer
              %s197 = sadd.s32 1, %s193
            $region68: #{custom-call.26} parent=61 // loop_footer_branch
              %192 = sbr.rel target = $region64
            $region69: #{custom-call.26} parent=61 // loop_exit
              _
          $region62: #{custom-call.26} parent=53 // pred_fallthru
            _
        $region54: #{custom-call.26} parent=49 // pred_fallthru
          _
        %216 = vnop
      $region50: #{custom-call.26} parent=5 // pred_fallthru
        _
      %p217 = scmp.le.s32.totalorder 2, %s3
      // Predicated region
      $region81: #{custom-call.26} parent=5 // pred_check
        %p218 = pneg %p217
      $region82: #{custom-call.26} parent=5 // pred_check_branch
        %220 = sbr.rel (%p218) target = $region84
      $region83: #{custom-call.26} parent=5 // pred_region
        %s221 = ssub.s32 %s3, 2
        %s222 = sand.u32 %s9, 1
        %s223 = sand.u32 %s9, 1
        %s224 = smul.addr %s223, 4
        %s225 = scalar_lea.vmem [#allocation3], %s224
      $region84: #{custom-call.26} parent=5 // pred_fallthru
        _
    $region6: #{custom-call.26} parent=1 // loop_footer
      %s7 = sadd.s32 1, %s3
    $region7: #{custom-call.26} parent=1 // loop_footer_branch
      %2 = sbr.rel target = $region3
    $region8: #{custom-call.26} parent=1 // loop_exit
      _

// kernel: custom-call.25
$region0: #{custom-call.25}
  %s0 = inlined_call_operand.vmem [shape: f32[2,1,3,3], index: 0, kind: input, shape index: {}]
  %s1 = inlined_call_operand.vmem [shape: f32[2,1,3,3], index: 1, kind: output, shape index: {}]
  $region1: #{custom-call.25} parent=0
    #allocation0 [shape = 'u8[4096]{0}', space=vmem, size = 0x1000, scoped, tag = 'operand span for operand 0']
    #allocation1 [shape = 'u8[4096]{0}', space=vmem, size = 0x1000, scoped, tag = 'packed  for operand 0']
    #allocation2 [shape = 'u8[4096]{0}', space=vmem, size = 0x1000, scoped, tag = 'operand span for operand 1']
    #allocation3 [shape = 'u8[4096]{0}', space=vmem, size = 0x1000, scoped, tag = 'packed  for operand 1']
    loop: start=0, step=1, limit=4
    $region2: #{custom-call.25} parent=1 // loop_pre_header
      _
    $region3: #{custom-call.25} parent=1 // loop_header
      %s3 = sphi 0, %s7
      %p4 = scmp.ge.s32.totalorder %s3, 4
      %s10 = sphi 0, %s36
      %s11 = sphi 0, %s32
      %s12 = sphi 0, %s28
      %s13 = sphi 0, %s24
      %s14 = sphi 0, %s10
      %s15 = sphi 0, %s11
      %s16 = sphi 0, %s12
      %s17 = sphi 0, %s13
      %s18 = sphi 0, %s14
      %s19 = sphi 0, %s15
      %s20 = sphi 0, %s16
      %s21 = sphi 0, %s17
    $region4: #{custom-call.25} parent=1 // loop_header_branch
      %6 = sbr.rel (%p4) target = $region8
    $region5: #{custom-call.25} parent=1 // loop_body
      %s8 = ssub.s32 %s3, 1
      %s9 = ssub.s32 %s3, 2
      %s22 = sadd.s32 1, %s13
      %p23 = scmp.ge.s32.totalorder %s22, 1
      %s24 = scalar_select %p23, 0, %s22
      %s25 = sadd.s32 1, %s12
      %s26 = scalar_select %p23, %s25, %s12
      %p27 = scmp.ge.s32.totalorder %s26, 1
      %s28 = scalar_select %p27, 0, %s26
      %s29 = sadd.s32 1, %s11
      %s30 = scalar_select %p27, %s29, %s11
      %p31 = scmp.ge.s32.totalorder %s30, 1
      %s32 = scalar_select %p31, 0, %s30
      %s33 = sadd.s32 1, %s10
      %s34 = scalar_select %p31, %s33, %s10
      %p35 = scmp.ge.s32.totalorder %s34, 2
      %s36 = scalar_select %p35, 0, %s34
      %p37 = scmp.le.s32.totalorder 1, %s3
      %p38 = scmp.lt.s32.totalorder %s3, 3
      %p39 = pnand %p37, %p38
      %p40 = pneg %p39
      // Predicated region
      $region9: #{custom-call.25} parent=5 // pred_check
        _
      $region10: #{custom-call.25} parent=5 // pred_check_branch
        %42 = sbr.rel (%p39) target = $region12
      $region11: #{custom-call.25} parent=5 // pred_region
        %s43 = ssub.s32 %s3, 1
      $region12: #{custom-call.25} parent=5 // pred_fallthru
        _
      %p44 = scmp.lt.s32.totalorder %s3, 2
      // Predicated region
      $region13: #{custom-call.25} parent=5 // pred_check
        %p45 = pneg %p44
      $region14: #{custom-call.25} parent=5 // pred_check_branch
        %47 = sbr.rel (%p45) target = $region16
      $region15: #{custom-call.25} parent=5 // pred_region
        %s48 = sand.u32 %s3, 1
        %s49 = sand.u32 %s3, 1
        %s50 = smul.addr %s49, 4
        %s51 = scalar_lea.vmem [#allocation1], %s50
        %s52 = sadd.s32 %s13, %s12
        %s53 = sadd.s32 %s52, %s11
        %s54 = sadd.s32 %s53, %s10
        %s55 = smul.addr %s54, 4
        %s56 = scalar_lea.vmem %s0, %s55
        // Predicated region
        $region17: #{custom-call.25} parent=15 // pred_check
          _
        $region18: #{custom-call.25} parent=15 // pred_check_branch
          %58 = sbr.rel (0) target = $region20
        $region19: #{custom-call.25} parent=15 // pred_region
          // Predicated region
          $region21: #{custom-call.25} parent=19 // pred_check
            _
          $region22: #{custom-call.25} parent=19 // pred_check_branch
            %60 = sbr.rel target = $region24
          $region23: #{custom-call.25} parent=19 // pred_region
            // Predicated region
            $region36: #{custom-call.25} parent=23 // pred_check
              _
            $region37: #{custom-call.25} parent=23 // pred_check_branch
              %76 = sbr.rel (0) target = $region39
            $region38: #{custom-call.25} parent=23 // pred_region
              %s78 = ssub.s32 16, 1
              loop: start=0, step=1, limit=1
              $region40: #{custom-call.25} parent=38 // loop_pre_header
                _
              $region41: #{custom-call.25} parent=38 // loop_header
                %s80 = sphi 0, %s84
                %p81 = scmp.ge.s32.totalorder %s80, 1
                %s85 = sphi %s56, %s56
                %s86 = sphi %s51, %s51
              $region42: #{custom-call.25} parent=38 // loop_header_branch
                %83 = sbr.rel (%p81) target = $region46
              $region43: #{custom-call.25} parent=38 // loop_body
                %v87 = vld [vmem:[%s85] sm:%s78]
                %88 = vst [vmem:[%s86] sm:%s78] %v87
              $region44: #{custom-call.25} parent=38 // loop_footer
                %s84 = sadd.s32 1, %s80
              $region45: #{custom-call.25} parent=38 // loop_footer_branch
                %79 = sbr.rel target = $region41
              $region46: #{custom-call.25} parent=38 // loop_exit
                _
            $region39: #{custom-call.25} parent=23 // pred_fallthru
              _
          $region24: #{custom-call.25} parent=19 // pred_fallthru
            _
          // Predicated region
          $region25: #{custom-call.25} parent=19 // pred_check
            _
          $region26: #{custom-call.25} parent=19 // pred_check_branch
            %62 = sbr.rel (0) target = $region28
          $region27: #{custom-call.25} parent=19 // pred_region
            %s64 = ssub.s32 16, 1
            loop: start=0, step=1, limit=1
            $region29: #{custom-call.25} parent=27 // loop_pre_header
              _
            $region30: #{custom-call.25} parent=27 // loop_header
              %s66 = sphi 0, %s70
              %p67 = scmp.ge.s32.totalorder %s66, 1
              %s71 = sphi %s56, %s56
              %s72 = sphi %s51, %s51
            $region31: #{custom-call.25} parent=27 // loop_header_branch
              %69 = sbr.rel (%p67) target = $region35
            $region32: #{custom-call.25} parent=27 // loop_body
              %v73 = vld [vmem:[%s71] sm:%s64]
              %74 = vst [vmem:[%s72] sm:%s64] %v73
            $region33: #{custom-call.25} parent=27 // loop_footer
              %s70 = sadd.s32 1, %s66
            $region34: #{custom-call.25} parent=27 // loop_footer_branch
              %65 = sbr.rel target = $region30
            $region35: #{custom-call.25} parent=27 // loop_exit
              _
          $region28: #{custom-call.25} parent=19 // pred_fallthru
            _
        $region20: #{custom-call.25} parent=15 // pred_fallthru
          _
        %89 = vnop
      $region16: #{custom-call.25} parent=5 // pred_fallthru
        _
      %p90 = scmp.le.s32.totalorder 1, %s3
      %p91 = scmp.lt.s32.totalorder %s3, 3
      %p92 = pnand %p90, %p91
      %p93 = pneg %p92
      // Predicated region
      $region47: #{custom-call.25} parent=5 // pred_check
        _
      $region48: #{custom-call.25} parent=5 // pred_check_branch
        %95 = sbr.rel (%p92) target = $region50
      $region49: #{custom-call.25} parent=5 // pred_region
        #allocation4 [shape = 'f32[3,3]{1,0}', space=vmem, size = 0x1000, scoped, tag = 'rescaled input a']
        %s96 = ssub.s32 %s3, 1
        %s97 = sand.u32 %s8, 1
        %s98 = sand.u32 %s8, 1
        %s99 = smul.addr %s98, 4
        %s100 = scalar_lea.vmem [#allocation1], %s99
        %s101 = sand.u32 %s8, 1
        %s102 = sand.u32 %s8, 1
        %s103 = smul.addr %s102, 4
        %s104 = scalar_lea.vmem [#allocation1], %s103
        %s105 = sand.u32 %s8, 1
        %s106 = sand.u32 %s8, 1
        %s107 = smul.addr %s106, 4
        %s108 = scalar_lea.vmem [#allocation3], %s107
        %s110 = sshll.u32 1, 4
        %s111 = ssub.s32 %s110, 1
        %v112 = vld [vmem:[%s104] sm:%s111]
        %113 = vst [vmem:[#allocation0] sm:%s111] %v112
        %v114 = vlaneseq
        %v115 = vand.u32 %v114, 127
        %vm116 = vcmp.lt.s32.totalorder %v115, 3
        %v117 = vlaneseq
        %v118 = vshrl.u32 %v117, 7
        %vm120 = vcmp.eq.s32.totalorder %v118, %v115
        %v121 = vld [vmem:[#allocation0] sm:$0xff]
        %v122 = vsel %vm120, %v121, 0.0
        %123 = vadd.xlane.f32.xlu0 %v122
        %v124 = vpop.xlane.xlu0 %123
        %vm125 = vcmp.le.s32.totalorder %v118, %v115
        %vm126 = vmand %vm125, %vm116
        %v127 = vsel %vm126, %v121, 0.0
        %v128 = vrcp.pop %v124
        %v129 = vmul.f32 %v127, %v128
        %130 = vst [vmem:[#allocation4] sm:$0xff] %v129
        %v131 = vlaneseq
        %v132 = vand.u32 %v131, 127
        %v133 = vlaneseq
        %v134 = vshrl.u32 %v133, 7
        %vm136 = vcmp.eq.s32.totalorder %v132, %v134
        %v137 = vlaneseq
        %v138 = vand.u32 %v137, 127
        %vm139 = vcmp.eq.s32.totalorder %v138, 2
        %v140 = vsel %vm139, 1.0, -1.0
        %v141 = vsel %vm136, %v140, 0.0
        %s142 = scalar_lea.vmem [#allocation4], 1
        %v143 = vld [vmem:[%s142] ss:$0 sm:$0xff]
        %v144 = vxor.u32 %v143, 2147483648
        %v145 = vlaneseq
        %v146 = vand.u32 %v145, 127
        %vm147 = vcmp.eq.s32.totalorder %v146, 1
        %v148 = vmul.f32 %v144, %v141
        %149 = vadd.xlane.f32.xlu0 %v148
        %v150 = vpop.xlane.xlu0 %149
        %v151 = vsel %vm147, %v150, %v141
        %v152 = vld [vmem:[#allocation4] ss:$0 sm:$0xff]
        %v153 = vxor.u32 %v152, 2147483648
        %v154 = vlaneseq
        %v155 = vand.u32 %v154, 127
        %vm156 = vcmp.eq.s32.totalorder %v155, 0
        %v157 = vmul.f32 %v153, %v151
        %158 = vadd.xlane.f32.xlu0 %v157
        %v159 = vpop.xlane.xlu0 %158
        %v160 = vsel %vm156, %v159, %v151
        %v161 = vrcp.pop %v124
        %v162 = vmul.f32 %v160, %v161
        %vm163 = vweird.f32 %v124
        %v164 = vsel %vm163, %v160, %v162
        %165 = vst [vmem:[#allocation2] sm:$0xff] %v164
        %s167 = sshll.u32 1, 4
        %s168 = ssub.s32 %s167, 1
        %v170 = vld [vmem:[#allocation2] sm:%s168]
        %s171 = sshll.u32 1, 4
        %s172 = ssub.s32 %s171, 1
        %173 = vst [vmem:[%s108] sm:%s172] %v170
        %s174 = sand.u32 %s8, 1
        %s175 = sand.u32 %s8, 1
        %s176 = smul.addr %s175, 4
        %s177 = scalar_lea.vmem [#allocation3], %s176
        %s178 = sadd.s32 %s17, %s16
        %s179 = sadd.s32 %s178, %s15
        %s180 = sadd.s32 %s179, %s14
        %s181 = smul.addr %s180, 4
        %s182 = scalar_lea.vmem %s1, %s181
        // Predicated region
        $region51: #{custom-call.25} parent=49 // pred_check
          _
        $region52: #{custom-call.25} parent=49 // pred_check_branch
          %184 = sbr.rel (0) target = $region54
        $region53: #{custom-call.25} parent=49 // pred_region
          // Predicated region
          $region55: #{custom-call.25} parent=53 // pred_check
            _
          $region56: #{custom-call.25} parent=53 // pred_check_branch
            %186 = sbr.rel target = $region58
          $region57: #{custom-call.25} parent=53 // pred_region
            // Predicated region
            $region70: #{custom-call.25} parent=57 // pred_check
              _
            $region71: #{custom-call.25} parent=57 // pred_check_branch
              %202 = sbr.rel (0) target = $region73
            $region72: #{custom-call.25} parent=57 // pred_region
              %s204 = ssub.s32 16, 1
              loop: start=0, step=1, limit=1
              $region74: #{custom-call.25} parent=72 // loop_pre_header
                _
              $region75: #{custom-call.25} parent=72 // loop_header
                %s206 = sphi 0, %s210
                %p207 = scmp.ge.s32.totalorder %s206, 1
                %s211 = sphi %s177, %s177
                %s212 = sphi %s182, %s182
              $region76: #{custom-call.25} parent=72 // loop_header_branch
                %209 = sbr.rel (%p207) target = $region80
              $region77: #{custom-call.25} parent=72 // loop_body
                %v213 = vld [vmem:[%s211] sm:%s204]
                %214 = vst [vmem:[%s212] sm:%s204] %v213
              $region78: #{custom-call.25} parent=72 // loop_footer
                %s210 = sadd.s32 1, %s206
              $region79: #{custom-call.25} parent=72 // loop_footer_branch
                %205 = sbr.rel target = $region75
              $region80: #{custom-call.25} parent=72 // loop_exit
                _
            $region73: #{custom-call.25} parent=57 // pred_fallthru
              _
          $region58: #{custom-call.25} parent=53 // pred_fallthru
            _
          // Predicated region
          $region59: #{custom-call.25} parent=53 // pred_check
            _
          $region60: #{custom-call.25} parent=53 // pred_check_branch
            %188 = sbr.rel (0) target = $region62
          $region61: #{custom-call.25} parent=53 // pred_region
            %s190 = ssub.s32 16, 1
            loop: start=0, step=1, limit=1
            $region63: #{custom-call.25} parent=61 // loop_pre_header
              _
            $region64: #{custom-call.25} parent=61 // loop_header
              %s192 = sphi 0, %s196
              %p193 = scmp.ge.s32.totalorder %s192, 1
              %s197 = sphi %s177, %s177
              %s198 = sphi %s182, %s182
            $region65: #{custom-call.25} parent=61 // loop_header_branch
              %195 = sbr.rel (%p193) target = $region69
            $region66: #{custom-call.25} parent=61 // loop_body
              %v199 = vld [vmem:[%s197] sm:%s190]
              %200 = vst [vmem:[%s198] sm:%s190] %v199
            $region67: #{custom-call.25} parent=61 // loop_footer
              %s196 = sadd.s32 1, %s192
            $region68: #{custom-call.25} parent=61 // loop_footer_branch
              %191 = sbr.rel target = $region64
            $region69: #{custom-call.25} parent=61 // loop_exit
              _
          $region62: #{custom-call.25} parent=53 // pred_fallthru
            _
        $region54: #{custom-call.25} parent=49 // pred_fallthru
          _
        %215 = vnop
      $region50: #{custom-call.25} parent=5 // pred_fallthru
        _
      %p216 = scmp.le.s32.totalorder 2, %s3
      // Predicated region
      $region81: #{custom-call.25} parent=5 // pred_check
        %p217 = pneg %p216
      $region82: #{custom-call.25} parent=5 // pred_check_branch
        %219 = sbr.rel (%p217) target = $region84
      $region83: #{custom-call.25} parent=5 // pred_region
        %s220 = ssub.s32 %s3, 2
        %s221 = sand.u32 %s9, 1
        %s222 = sand.u32 %s9, 1
        %s223 = smul.addr %s222, 4
        %s224 = scalar_lea.vmem [#allocation3], %s223
      $region84: #{custom-call.25} parent=5 // pred_fallthru
        _
    $region6: #{custom-call.25} parent=1 // loop_footer
      %s7 = sadd.s32 1, %s3
    $region7: #{custom-call.25} parent=1 // loop_footer_branch
      %2 = sbr.rel target = $region3
    $region8: #{custom-call.25} parent=1 // loop_exit
      _

// kernel: reg3d_loss_iou.1
$region0: #{reg3d_loss_iou.1}
  #allocation0 [shape = 'u32[]', space=smem, size = 0x4, offset = 0x4, fixed_abs, tag = 'smem constant byte address 0x4 - core index']
  #allocation1 [shape = 'u32[144,128]{1,0:T(1,128)}', space=vmem, size = 0x12000, scoped, tag = 'internal scratch']
  %s0 = inlined_call_operand.vmem [shape: f32[40,128], index: 0, kind: input, shape index: {}]
  %s1 = inlined_call_operand.hbm [shape: f32[1,1], index: 1, kind: output, shape index: {}]
  %s2 = sld [smem:[#allocation0]]
  $region14: #{reg3d_loss_iou.1} parent=0
    _
  %s4 = ssub.s32 1, %s2
  %s5 = scalar_select 0, %s4, %s2
  $region1: #{reg3d_loss_iou.1} parent=0
    #allocation2 [shape = 'u8[512]{0}', space=vmem, size = 0x400, scoped, tag = 'output window, operand 0, single buffered']
    #allocation3 [shape = 's32[1]{0}', space=sflag, size = 0x4, scoped, tag = 'scoped memory for reg3d_loss_iou.1']
    %6 = vsyncpa [#allocation3], 0
    // Predicated region
    $region2: #{reg3d_loss_iou.1} parent=1 // pred_check
      _
    $region3: #{reg3d_loss_iou.1} parent=1 // pred_check_branch
      %8 = sbr.rel (0) target = $region5
    $region4: #{reg3d_loss_iou.1} parent=1 // pred_region
      _
    $region5: #{reg3d_loss_iou.1} parent=1 // pred_fallthru
      _
    %v9 = vld [vmem:[%s0 + $0x12] sm:$0x1]
    %v10 = vld [vmem:[%s0] sm:$0x1]
    %v11 = vmul.f32 %v10, %v9
    %v12 = vld [vmem:[%s0 + $0x1] sm:$0x1]
    %v13 = vmul.f32 %v12, %v9
    %v14 = vld [vmem:[%s0 + $0x2] sm:$0x1]
    %v15 = vmul.f32 %v14, %v9
    %v16 = vld [vmem:[%s0 + $0x3] sm:$0x1]
    %v17 = vmul.f32 %v16, %v9
    %v18 = vld [vmem:[%s0 + $0x4] sm:$0x1]
    %v19 = vmul.f32 %v18, %v9
    %v20 = vld [vmem:[%s0 + $0x5] sm:$0x1]
    %v21 = vmul.f32 %v20, %v9
    %v22 = vld [vmem:[%s0 + $0x6] sm:$0x1]
    %v23 = vmul.f32 %v22, %v9
    %v24 = vld [vmem:[%s0 + $0x7] sm:$0x1]
    %v25 = vmul.f32 %v24, %v9
    %v26 = vld [vmem:[%s0 + $0x8] sm:$0x1]
    %v27 = vmul.f32 %v26, %v9
    %v28 = vld [vmem:[%s0 + $0x9] sm:$0x1]
    %v29 = vmul.f32 %v28, %v9
    %v30 = vld [vmem:[%s0 + $0xa] sm:$0x1]
    %v31 = vmul.f32 %v30, %v9
    %v32 = vld [vmem:[%s0 + $0xb] sm:$0x1]
    %v33 = vmul.f32 %v32, %v9
    %v34 = vld [vmem:[%s0 + $0xc] sm:$0x1]
    %v35 = vmul.f32 %v34, %v9
    %v36 = vld [vmem:[%s0 + $0xd] sm:$0x1]
    %v37 = vmul.f32 %v36, %v9
    %v38 = vld [vmem:[%s0 + $0x10] sm:$0x1]
    %v39 = vld [vmem:[%s0 + $0x11] sm:$0x1]
    %v40 = vld [vmem:[%s0 + $0x13] sm:$0x1]
    %v41 = vld [vmem:[%s0 + $0x14] sm:$0x1]
    %v42 = vld [vmem:[%s0 + $0x15] sm:$0x1]
    %v43 = vld [vmem:[%s0 + $0x16] sm:$0x1]
    %v44 = vld [vmem:[%s0 + $0x17] sm:$0x1]
    %v45 = vld [vmem:[%s0 + $0x18] sm:$0x1]
    %v46 = vld [vmem:[%s0 + $0x19] sm:$0x1]
    %v47 = vld [vmem:[%s0 + $0x1a] sm:$0x1]
    %v48 = vld [vmem:[%s0 + $0x1b] sm:$0x1]
    %v49 = vld [vmem:[%s0 + $0x1c] sm:$0x1]
    %v50 = vld [vmem:[%s0 + $0x1d] sm:$0x1]
    %v51 = vld [vmem:[%s0 + $0x1e] sm:$0x1]
    %v52 = vld [vmem:[%s0 + $0x1f] sm:$0x1]
    %v53 = vld [vmem:[%s0 + $0x20] sm:$0x1]
    %v54 = vmul.f32 %v11, 16.32
    %v55 = vadd.f32 %v54, 28.01
    %v56 = vmul.f32 %v27, 16.32
    %v57 = vadd.f32 %v56, 28.01
    %v58 = vadd.f32 %v38, %v13
    %v59 = vadd.f32 %v39, %v15
    %v60 = vmul.f32 %v45, %v58
    %v61 = vmul.f32 %v46, %v59
    %v62 = vadd.f32 %v60, %v61
    %v63 = vadd.f32 %v62, %v47
    %v64 = vmul.f32 %v63, %v55
    %v65 = vmul.f32 %v48, %v58
    %v66 = vmul.f32 %v49, %v59
    %v67 = vadd.f32 %v65, %v66
    %v68 = vadd.f32 %v67, %v50
    %v69 = vmul.f32 %v68, %v55
    %v70 = vmul.f32 %v51, %v58
    %v71 = vmul.f32 %v52, %v59
    %v72 = vadd.f32 %v70, %v71
    %v73 = vadd.f32 %v72, %v53
    %v74 = vmul.f32 %v73, %v55
    %v75 = vadd.f32 %v38, %v29
    %v76 = vadd.f32 %v39, %v31
    %v77 = vmul.f32 %v45, %v75
    %v78 = vmul.f32 %v46, %v76
    %v79 = vadd.f32 %v77, %v78
    %v80 = vadd.f32 %v79, %v47
    %v81 = vmul.f32 %v80, %v57
    %v82 = vmul.f32 %v48, %v75
    %v83 = vmul.f32 %v49, %v76
    %v84 = vadd.f32 %v82, %v83
    %v85 = vadd.f32 %v84, %v50
    %v86 = vmul.f32 %v85, %v57
    %v87 = vmul.f32 %v51, %v75
    %v88 = vmul.f32 %v52, %v76
    %v89 = vadd.f32 %v87, %v88
    %v90 = vadd.f32 %v89, %v53
    %v91 = vmul.f32 %v90, %v57
    %v92 = vmul.f32 %v17, 1.442695
    %v93 = vpow.pop %v92
    %v94 = vmul.f32 %v93, %v42
    %v95 = vmul.f32 %v19, 1.442695
    %v96 = vpow.pop %v95
    %v97 = vmul.f32 %v96, %v43
    %v98 = vmul.f32 %v21, 1.442695
    %v99 = vpow.pop %v98
    %v100 = vmul.f32 %v99, %v44
    %v101 = vmul.f32 %v33, 1.442695
    %v102 = vpow.pop %v101
    %v103 = vmul.f32 %v102, %v42
    %v104 = vmul.f32 %v35, 1.442695
    %v105 = vpow.pop %v104
    %v106 = vmul.f32 %v105, %v43
    %v107 = vmul.f32 %v37, 1.442695
    %v108 = vpow.pop %v107
    %v109 = vmul.f32 %v108, %v44
    %v110 = vmul.f32 %v94, 0.5
    %v111 = vadd.f32 %v69, %v110
    %v112 = vmul.f32 %v103, 0.5
    %v113 = vadd.f32 %v86, %v112
    %v114 = vrcp.pop %v91
    %v115 = vmul.f32 %v81, %v114
    %v116 = vadd.f32 %v115, 1e-07
    %v117 = vand.u32 2147483647, %v116
    %vm118 = vcmp.gt.f32.partialorder %v117, 2.4142137
    %vm119 = vcmp.gt.f32.partialorder %v117, 0.41421357
    %v120 = vrcp.pop %v117
    %v121 = vmul.f32 -1.0, %v120
    %v122 = vsub.f32 %v117, 1.0
    %v123 = vadd.f32 %v117, 1.0
    %v124 = vrcp.pop %v123
    %v125 = vmul.f32 %v122, %v124
    %v126 = vsel %vm119, %v125, %v117
    %v127 = vsel %vm118, %v121, %v126
    %v128 = vsel %vm119, 0.7853982, 0.0
    %v129 = vsel %vm118, 1.5707964, %v128
    %v130 = vmul.f32 %v127, %v127
    %v131 = vmul.f32 %v130, 0.080537446
    %v132 = vsub.f32 %v131, 0.13877685
    %v133 = vmul.f32 %v132, %v130
    %v134 = vadd.f32 %v133, 0.19977711
    %v135 = vmul.f32 %v134, %v130
    %v136 = vsub.f32 %v135, 0.3333295
    %v137 = vmul.f32 %v136, %v130
    %v138 = vmul.f32 %v137, %v127
    %v139 = vadd.f32 %v138, %v127
    %v140 = vadd.f32 %v129, %v139
    %vm141 = vcmp.lt.f32.partialorder %v116, 0.0
    %v142 = vsub.f32 0.0, %v140
    %v143 = vsel %vm141, %v142, %v140
    %v144 = vadd.f32 %v25, 1e-07
    %v145 = vrcp.pop %v144
    %v146 = vmul.f32 %v23, %v145
    %v147 = vand.u32 2147483647, %v146
    %vm148 = vcmp.gt.f32.partialorder %v147, 2.4142137
    %vm149 = vcmp.gt.f32.partialorder %v147, 0.41421357
    %v150 = vrcp.pop %v147
    %v151 = vmul.f32 -1.0, %v150
    %v152 = vsub.f32 %v147, 1.0
    %v153 = vadd.f32 %v147, 1.0
    %v154 = vrcp.pop %v153
    %v155 = vmul.f32 %v152, %v154
    %v156 = vsel %vm149, %v155, %v147
    %v157 = vsel %vm148, %v151, %v156
    %v158 = vsel %vm149, 0.7853982, 0.0
    %v159 = vsel %vm148, 1.5707964, %v158
    %v160 = vmul.f32 %v157, %v157
    %v161 = vmul.f32 %v160, 0.080537446
    %v162 = vsub.f32 %v161, 0.13877685
    %v163 = vmul.f32 %v162, %v160
    %v164 = vadd.f32 %v163, 0.19977711
    %v165 = vmul.f32 %v164, %v160
    %v166 = vsub.f32 %v165, 0.3333295
    %v167 = vmul.f32 %v166, %v160
    %v168 = vmul.f32 %v167, %v157
    %v169 = vadd.f32 %v168, %v157
    %v170 = vadd.f32 %v159, %v169
    %vm171 = vcmp.lt.f32.partialorder %v146, 0.0
    %v172 = vsub.f32 0.0, %v170
    %v173 = vsel %vm171, %v172, %v170
    %vm174 = vcmp.ge.f32.partialorder %v25, 0.0
    %v175 = vsub.f32 %v173, 1.5707963
    %v176 = vadd.f32 %v173, 1.5707963
    %v177 = vsel %vm174, %v175, %v176
    %v178 = vadd.f32 %v177, %v143
    %vm179 = vcmp.gt.f32.partialorder %v178, 3.1415925
    %v180 = vsub.f32 %v178, 6.283185
    %v181 = vsel %vm179, %v180, %v178
    %vm182 = vcmp.lt.f32.partialorder %v181, -3.1415925
    %v183 = vadd.f32 %v181, 6.283185
    %v184 = vsel %vm182, %v183, %v181
    %v185 = vmul.f32 %v40, %v184
    %vm186 = vcmp.gt.f32.partialorder %v185, 0.0
    %v187 = vsub.f32 %v185, 3.1415925
    %vm188 = vcmp.lt.f32.partialorder %v185, 0.0
    %v189 = vadd.f32 %v185, 3.1415925
    %v190 = vsel %vm188, %v189, %v185
    %v191 = vsel %vm186, %v187, %v190
    %v192 = vmul.f32 %v40, %v191
    %v193 = vsub.f32 1.0, %v40
    %v194 = vmul.f32 %v193, %v184
    %v195 = vadd.f32 %v192, %v194
    %v196 = vmul.f32 %v9, %v195
    %v197 = vmul.f32 %v9, %v41
    %v198 = vand.u32 2147483647, %v196
    %vm199 = vcmp.le.f32.partialorder %v198, 0.7853982
    %vm200 = vcmp.lt.s32.totalorder %v196, 0
    %v201 = vand.u32 %v196, 2139095040
    %v202 = vshrl.u32 %v201, 23
    %v203 = vsub.s32 %v202, 127
    %v204 = vand.u32 2147483647, %v196
    %v205 = vand.u32 %v204, 8388607
    %v206 = vor.u32 %v205, 8388608
    %v207 = vsub.s32 0, %v206
    %v208 = vadd.s32 %v203, 1
    %vm209 = vcmp.gt.s32.totalorder %v208, 0
    %v210 = vsel %vm209, %v208, 0
    %v211 = vshrl.u32 %v210, 5
    %v212 = vand.u32 %v210, 31
    %v213 = vsub.s32 32, %v212
    %v214 = vshrl.u32 683565275, %v213
    %v215 = vshll.u32 683565275, %v212
    %v216 = vshrl.u32 2475754826, %v213
    %v217 = vor.u32 %v215, %v216
    %v218 = vshll.u32 2475754826, %v212
    %v219 = vshrl.u32 2131351028, %v213
    %v220 = vor.u32 %v218, %v219
    %v221 = vshll.u32 2131351028, %v212
    %v222 = vshrl.u32 2102212464, %v213
    %v223 = vor.u32 %v221, %v222
    %v224 = vshll.u32 2102212464, %v212
    %v225 = vshrl.u32 920167782, %v213
    %v226 = vor.u32 %v224, %v225
    %v227 = vshll.u32 920167782, %v212
    %v228 = vshrl.u32 1326507024, %v213
    %v229 = vor.u32 %v227, %v228
    %vm230 = vcmp.lt.s32.totalorder %v211, 1
    %vm231 = vcmp.lt.s32.totalorder %v211, 2
    %vm232 = vcmp.lt.s32.totalorder %v211, 3
    %vm233 = vcmp.lt.s32.totalorder %v211, 4
    %v234 = vsel %vm230, %v214, %v217
    %v235 = vsel %vm233, %v223, 2102212464
    %v236 = vsel %vm232, %v220, %v235
    %v237 = vsel %vm231, %v234, %v236
    %v238 = vsel %vm230, %v217, %v220
    %v239 = vsel %vm233, %v226, 920167782
    %v240 = vsel %vm232, %v223, %v239
    %v241 = vsel %vm231, %v238, %v240
    %v242 = vsel %vm230, %v220, %v223
    %v243 = vsel %vm233, %v229, 1326507024
    %v244 = vsel %vm232, %v226, %v243
    %v245 = vsel %vm231, %v242, %v244
    %v246 = vshll.u32 %v206, 8
    %v247 = vmul.u32.u64.compose %v246, %v245
    %v248 = vextract.low.u32 %v247
    %v249 = vextract.high.u32 %v247
    %v250 = vmul.u32.u64.compose %v246, %v241
    %v251 = vextract.low.u32 %v250
    %v252 = vextract.high.u32 %v250
    %v253 = vmul.u32 %v246, %v237
    %v254 = vadd.s32 %v249, %v251
    %vm255 = vc.u32 %v249, %v251
    %v256 = vadd.s32 %v252, 1
    %v257 = vsel %vm255, %v256, %v252
    %v258 = vadd.s32 %v253, %v257
    %v259 = vadd.s32 %v258, 536870912
    %v260 = vshrl.u32 %v259, 30
    %v261 = vshll.u32 %v260, 30
    %v262 = vsub.s32 %v258, %v261
    %vm263 = vcmp.lt.s32.totalorder %v262, 0
    %v264 = vsub.s32 0, %v262
    %v265 = vsel %vm263, %v264, %v262
    %v266 = vclz %v265
    %v267 = vsub.s32 %v266, 2
    %vm268 = vcmp.gt.s32.totalorder 0, %v267
    %v269 = vsel %vm268, 0, %v267
    %v270 = vsub.s32 32, %v269
    %v271 = vshll.u32 %v262, %v269
    %v272 = vshrl.u32 %v254, %v270
    %v273 = vor.u32 %v271, %v272
    %v274 = vsub.s32 4294967266, %v269
    %v275 = vadd.s32 %v274, 127
    %v276 = vshll.u32 %v275, 23
    %v277 = vor.u32 4788187, %v276
    %v278 = vand.u32 2147483647, %v277
    %v280 = vcvt.s32.f32 %v273
    %v281 = vmul.f32 %v280, %v278
    %v282 = vxor.u32 %v281, 2147483648
    %v283 = vsel %vm200, %v282, %v281
    %v284 = vsub.s32 4, %v260
    %v285 = vsel %vm200, %v284, %v260
    %v286 = vsel %vm199, %v196, %v283
    %v287 = vsel %vm199, 0, %v285
    %v288 = vcosq.f32.pop %v286
    %v289 = vsinq.f32.pop %v286
    %vm290 = vweird.f32 %v196
    %v291 = vand.u32 %v287, 3
    %vm292 = vcmp.lt.s32.totalorder %v291, 2
    %vm293 = vcmp.eq.s32.totalorder %v291, 0
    %v294 = vxor.u32 %v289, 2147483648
    %v295 = vsel %vm293, %v288, %v294
    %vm296 = vcmp.eq.s32.totalorder %v291, 2
    %v297 = vxor.u32 %v288, 2147483648
    %v298 = vsel %vm296, %v297, %v289
    %v299 = vsel %vm292, %v295, %v298
    %v300 = vsel %vm290, nan, %v299
    %v301 = vand.u32 2147483647, %v196
    %vm302 = vcmp.le.f32.partialorder %v301, 0.7853982
    %vm303 = vcmp.lt.s32.totalorder %v196, 0
    %v304 = vand.u32 %v196, 2139095040
    %v305 = vshrl.u32 %v304, 23
    %v306 = vsub.s32 %v305, 127
    %v307 = vand.u32 2147483647, %v196
    %v308 = vand.u32 %v307, 8388607
    %v309 = vor.u32 %v308, 8388608
    %v310 = vsub.s32 0, %v309
    %v311 = vadd.s32 %v306, 1
    %vm312 = vcmp.gt.s32.totalorder %v311, 0
    %v313 = vsel %vm312, %v311, 0
    %v314 = vshrl.u32 %v313, 5
    %v315 = vand.u32 %v313, 31
    %v316 = vsub.s32 32, %v315
    %v317 = vshrl.u32 683565275, %v316
    %v318 = vshll.u32 683565275, %v315
    %v319 = vshrl.u32 2475754826, %v316
    %v320 = vor.u32 %v318, %v319
    %v321 = vshll.u32 2475754826, %v315
    %v322 = vshrl.u32 2131351028, %v316
    %v323 = vor.u32 %v321, %v322
    %v324 = vshll.u32 2131351028, %v315
    %v325 = vshrl.u32 2102212464, %v316
    %v326 = vor.u32 %v324, %v325
    %v327 = vshll.u32 2102212464, %v315
    %v328 = vshrl.u32 920167782, %v316
    %v329 = vor.u32 %v327, %v328
    %v330 = vshll.u32 920167782, %v315
    %v331 = vshrl.u32 1326507024, %v316
    %v332 = vor.u32 %v330, %v331
    %vm333 = vcmp.lt.s32.totalorder %v314, 1
    %vm334 = vcmp.lt.s32.totalorder %v314, 2
    %vm335 = vcmp.lt.s32.totalorder %v314, 3
    %vm336 = vcmp.lt.s32.totalorder %v314, 4
    %v337 = vsel %vm333, %v317, %v320
    %v338 = vsel %vm336, %v326, 2102212464
    %v339 = vsel %vm335, %v323, %v338
    %v340 = vsel %vm334, %v337, %v339
    %v341 = vsel %vm333, %v320, %v323
    %v342 = vsel %vm336, %v329, 920167782
    %v343 = vsel %vm335, %v326, %v342
    %v344 = vsel %vm334, %v341, %v343
    %v345 = vsel %vm333, %v323, %v326
    %v346 = vsel %vm336, %v332, 1326507024
    %v347 = vsel %vm335, %v329, %v346
    %v348 = vsel %vm334, %v345, %v347
    %v349 = vshll.u32 %v309, 8
    %v350 = vmul.u32.u64.compose %v349, %v348
    %v351 = vextract.low.u32 %v350
    %v352 = vextract.high.u32 %v350
    %v353 = vmul.u32.u64.compose %v349, %v344
    %v354 = vextract.low.u32 %v353
    %v355 = vextract.high.u32 %v353
    %v356 = vmul.u32 %v349, %v340
    %v357 = vadd.s32 %v352, %v354
    %vm358 = vc.u32 %v352, %v354
    %v359 = vadd.s32 %v355, 1
    %v360 = vsel %vm358, %v359, %v355
    %v361 = vadd.s32 %v356, %v360
    %v362 = vadd.s32 %v361, 536870912
    %v363 = vshrl.u32 %v362, 30
    %v364 = vshll.u32 %v363, 30
    %v365 = vsub.s32 %v361, %v364
    %vm366 = vcmp.lt.s32.totalorder %v365, 0
    %v367 = vsub.s32 0, %v365
    %v368 = vsel %vm366, %v367, %v365
    %v369 = vclz %v368
    %v370 = vsub.s32 %v369, 2
    %vm371 = vcmp.gt.s32.totalorder 0, %v370
    %v372 = vsel %vm371, 0, %v370
    %v373 = vsub.s32 32, %v372
    %v374 = vshll.u32 %v365, %v372
    %v375 = vshrl.u32 %v357, %v373
    %v376 = vor.u32 %v374, %v375
    %v377 = vsub.s32 4294967266, %v372
    %v378 = vadd.s32 %v377, 127
    %v379 = vshll.u32 %v378, 23
    %v380 = vor.u32 4788187, %v379
    %v381 = vand.u32 2147483647, %v380
    %v383 = vcvt.s32.f32 %v376
    %v384 = vmul.f32 %v383, %v381
    %v385 = vxor.u32 %v384, 2147483648
    %v386 = vsel %vm303, %v385, %v384
    %v387 = vsub.s32 4, %v363
    %v388 = vsel %vm303, %v387, %v363
    %v389 = vsel %vm302, %v196, %v386
    %v390 = vsel %vm302, 0, %v388
    %v391 = vcosq.f32.pop %v389
    %v392 = vsinq.f32.pop %v389
    %vm393 = vweird.f32 %v196
    %v394 = vadd.s32 %v390, 3
    %v395 = vand.u32 %v394, 3
    %vm396 = vcmp.lt.s32.totalorder %v395, 2
    %vm397 = vcmp.eq.s32.totalorder %v395, 0
    %v398 = vxor.u32 %v392, 2147483648
    %v399 = vsel %vm397, %v391, %v398
    %vm400 = vcmp.eq.s32.totalorder %v395, 2
    %v401 = vxor.u32 %v391, 2147483648
    %v402 = vsel %vm400, %v401, %v392
    %v403 = vsel %vm396, %v399, %v402
    %v404 = vsel %vm393, nan, %v403
    %v405 = vand.u32 2147483647, %v197
    %vm406 = vcmp.le.f32.partialorder %v405, 0.7853982
    %vm407 = vcmp.lt.s32.totalorder %v197, 0
    %v408 = vand.u32 %v197, 2139095040
    %v409 = vshrl.u32 %v408, 23
    %v410 = vsub.s32 %v409, 127
    %v411 = vand.u32 2147483647, %v197
    %v412 = vand.u32 %v411, 8388607
    %v413 = vor.u32 %v412, 8388608
    %v414 = vsub.s32 0, %v413
    %v415 = vadd.s32 %v410, 1
    %vm416 = vcmp.gt.s32.totalorder %v415, 0
    %v417 = vsel %vm416, %v415, 0
    %v418 = vshrl.u32 %v417, 5
    %v419 = vand.u32 %v417, 31
    %v420 = vsub.s32 32, %v419
    %v421 = vshrl.u32 683565275, %v420
    %v422 = vshll.u32 683565275, %v419
    %v423 = vshrl.u32 2475754826, %v420
    %v424 = vor.u32 %v422, %v423
    %v425 = vshll.u32 2475754826, %v419
    %v426 = vshrl.u32 2131351028, %v420
    %v427 = vor.u32 %v425, %v426
    %v428 = vshll.u32 2131351028, %v419
    %v429 = vshrl.u32 2102212464, %v420
    %v430 = vor.u32 %v428, %v429
    %v431 = vshll.u32 2102212464, %v419
    %v432 = vshrl.u32 920167782, %v420
    %v433 = vor.u32 %v431, %v432
    %v434 = vshll.u32 920167782, %v419
    %v435 = vshrl.u32 1326507024, %v420
    %v436 = vor.u32 %v434, %v435
    %vm437 = vcmp.lt.s32.totalorder %v418, 1
    %vm438 = vcmp.lt.s32.totalorder %v418, 2
    %vm439 = vcmp.lt.s32.totalorder %v418, 3
    %vm440 = vcmp.lt.s32.totalorder %v418, 4
    %v441 = vsel %vm437, %v421, %v424
    %v442 = vsel %vm440, %v430, 2102212464
    %v443 = vsel %vm439, %v427, %v442
    %v444 = vsel %vm438, %v441, %v443
    %v445 = vsel %vm437, %v424, %v427
    %v446 = vsel %vm440, %v433, 920167782
    %v447 = vsel %vm439, %v430, %v446
    %v448 = vsel %vm438, %v445, %v447
    %v449 = vsel %vm437, %v427, %v430
    %v450 = vsel %vm440, %v436, 1326507024
    %v451 = vsel %vm439, %v433, %v450
    %v452 = vsel %vm438, %v449, %v451
    %v453 = vshll.u32 %v413, 8
    %v454 = vmul.u32.u64.compose %v453, %v452
    %v455 = vextract.low.u32 %v454
    %v456 = vextract.high.u32 %v454
    %v457 = vmul.u32.u64.compose %v453, %v448
    %v458 = vextract.low.u32 %v457
    %v459 = vextract.high.u32 %v457
    %v460 = vmul.u32 %v453, %v444
    %v461 = vadd.s32 %v456, %v458
    %vm462 = vc.u32 %v456, %v458
    %v463 = vadd.s32 %v459, 1
    %v464 = vsel %vm462, %v463, %v459
    %v465 = vadd.s32 %v460, %v464
    %v466 = vadd.s32 %v465, 536870912
    %v467 = vshrl.u32 %v466, 30
    %v468 = vshll.u32 %v467, 30
    %v469 = vsub.s32 %v465, %v468
    %vm470 = vcmp.lt.s32.totalorder %v469, 0
    %v471 = vsub.s32 0, %v469
    %v472 = vsel %vm470, %v471, %v469
    %v473 = vclz %v472
    %v474 = vsub.s32 %v473, 2
    %vm475 = vcmp.gt.s32.totalorder 0, %v474
    %v476 = vsel %vm475, 0, %v474
    %v477 = vsub.s32 32, %v476
    %v478 = vshll.u32 %v469, %v476
    %v479 = vshrl.u32 %v461, %v477
    %v480 = vor.u32 %v478, %v479
    %v481 = vsub.s32 4294967266, %v476
    %v482 = vadd.s32 %v481, 127
    %v483 = vshll.u32 %v482, 23
    %v484 = vor.u32 4788187, %v483
    %v485 = vand.u32 2147483647, %v484
    %v487 = vcvt.s32.f32 %v480
    %v488 = vmul.f32 %v487, %v485
    %v489 = vxor.u32 %v488, 2147483648
    %v490 = vsel %vm407, %v489, %v488
    %v491 = vsub.s32 4, %v467
    %v492 = vsel %vm407, %v491, %v467
    %v493 = vsel %vm406, %v197, %v490
    %v494 = vsel %vm406, 0, %v492
    %v495 = vcosq.f32.pop %v493
    %v496 = vsinq.f32.pop %v493
    %vm497 = vweird.f32 %v197
    %v498 = vand.u32 %v494, 3
    %vm499 = vcmp.lt.s32.totalorder %v498, 2
    %vm500 = vcmp.eq.s32.totalorder %v498, 0
    %v501 = vxor.u32 %v496, 2147483648
    %v502 = vsel %vm500, %v495, %v501
    %vm503 = vcmp.eq.s32.totalorder %v498, 2
    %v504 = vxor.u32 %v495, 2147483648
    %v505 = vsel %vm503, %v504, %v496
    %v506 = vsel %vm499, %v502, %v505
    %v507 = vsel %vm497, nan, %v506
    %v508 = vand.u32 2147483647, %v197
    %vm509 = vcmp.le.f32.partialorder %v508, 0.7853982
    %vm510 = vcmp.lt.s32.totalorder %v197, 0
    %v511 = vand.u32 %v197, 2139095040
    %v512 = vshrl.u32 %v511, 23
    %v513 = vsub.s32 %v512, 127
    %v514 = vand.u32 2147483647, %v197
    %v515 = vand.u32 %v514, 8388607
    %v516 = vor.u32 %v515, 8388608
    %v517 = vsub.s32 0, %v516
    %v518 = vadd.s32 %v513, 1
    %vm519 = vcmp.gt.s32.totalorder %v518, 0
    %v520 = vsel %vm519, %v518, 0
    %v521 = vshrl.u32 %v520, 5
    %v522 = vand.u32 %v520, 31
    %v523 = vsub.s32 32, %v522
    %v524 = vshrl.u32 683565275, %v523
    %v525 = vshll.u32 683565275, %v522
    %v526 = vshrl.u32 2475754826, %v523
    %v527 = vor.u32 %v525, %v526
    %v528 = vshll.u32 2475754826, %v522
    %v529 = vshrl.u32 2131351028, %v523
    %v530 = vor.u32 %v528, %v529
    %v531 = vshll.u32 2131351028, %v522
    %v532 = vshrl.u32 2102212464, %v523
    %v533 = vor.u32 %v531, %v532
    %v534 = vshll.u32 2102212464, %v522
    %v535 = vshrl.u32 920167782, %v523
    %v536 = vor.u32 %v534, %v535
    %v537 = vshll.u32 920167782, %v522
    %v538 = vshrl.u32 1326507024, %v523
    %v539 = vor.u32 %v537, %v538
    %vm540 = vcmp.lt.s32.totalorder %v521, 1
    %vm541 = vcmp.lt.s32.totalorder %v521, 2
    %vm542 = vcmp.lt.s32.totalorder %v521, 3
    %vm543 = vcmp.lt.s32.totalorder %v521, 4
    %v544 = vsel %vm540, %v524, %v527
    %v545 = vsel %vm543, %v533, 2102212464
    %v546 = vsel %vm542, %v530, %v545
    %v547 = vsel %vm541, %v544, %v546
    %v548 = vsel %vm540, %v527, %v530
    %v549 = vsel %vm543, %v536, 920167782
    %v550 = vsel %vm542, %v533, %v549
    %v551 = vsel %vm541, %v548, %v550
    %v552 = vsel %vm540, %v530, %v533
    %v553 = vsel %vm543, %v539, 1326507024
    %v554 = vsel %vm542, %v536, %v553
    %v555 = vsel %vm541, %v552, %v554
    %v556 = vshll.u32 %v516, 8
    %v557 = vmul.u32.u64.compose %v556, %v555
    %v558 = vextract.low.u32 %v557
    %v559 = vextract.high.u32 %v557
    %v560 = vmul.u32.u64.compose %v556, %v551
    %v561 = vextract.low.u32 %v560
    %v562 = vextract.high.u32 %v560
    %v563 = vmul.u32 %v556, %v547
    %v564 = vadd.s32 %v559, %v561
    %vm565 = vc.u32 %v559, %v561
    %v566 = vadd.s32 %v562, 1
    %v567 = vsel %vm565, %v566, %v562
    %v568 = vadd.s32 %v563, %v567
    %v569 = vadd.s32 %v568, 536870912
    %v570 = vshrl.u32 %v569, 30
    %v571 = vshll.u32 %v570, 30
    %v572 = vsub.s32 %v568, %v571
    %vm573 = vcmp.lt.s32.totalorder %v572, 0
    %v574 = vsub.s32 0, %v572
    %v575 = vsel %vm573, %v574, %v572
    %v576 = vclz %v575
    %v577 = vsub.s32 %v576, 2
    %vm578 = vcmp.gt.s32.totalorder 0, %v577
    %v579 = vsel %vm578, 0, %v577
    %v580 = vsub.s32 32, %v579
    %v581 = vshll.u32 %v572, %v579
    %v582 = vshrl.u32 %v564, %v580
    %v583 = vor.u32 %v581, %v582
    %v584 = vsub.s32 4294967266, %v579
    %v585 = vadd.s32 %v584, 127
    %v586 = vshll.u32 %v585, 23
    %v587 = vor.u32 4788187, %v586
    %v588 = vand.u32 2147483647, %v587
    %v590 = vcvt.s32.f32 %v583
    %v591 = vmul.f32 %v590, %v588
    %v592 = vxor.u32 %v591, 2147483648
    %v593 = vsel %vm510, %v592, %v591
    %v594 = vsub.s32 4, %v570
    %v595 = vsel %vm510, %v594, %v570
    %v596 = vsel %vm509, %v197, %v593
    %v597 = vsel %vm509, 0, %v595
    %v598 = vcosq.f32.pop %v596
    %v599 = vsinq.f32.pop %v596
    %vm600 = vweird.f32 %v197
    %v601 = vadd.s32 %v597, 3
    %v602 = vand.u32 %v601, 3
    %vm603 = vcmp.lt.s32.totalorder %v602, 2
    %vm604 = vcmp.eq.s32.totalorder %v602, 0
    %v605 = vxor.u32 %v599, 2147483648
    %v606 = vsel %vm604, %v598, %v605
    %vm607 = vcmp.eq.s32.totalorder %v602, 2
    %v608 = vxor.u32 %v598, 2147483648
    %v609 = vsel %vm607, %v608, %v599
    %v610 = vsel %vm603, %v606, %v609
    %v611 = vsel %vm600, nan, %v610
    %v612 = vsub.f32 %v300, %v507
    %v613 = vsub.f32 %v404, %v611
    %v614 = vmul.f32 %v612, %v109
    %v615 = vmul.f32 %v613, %v103
    %v616 = vadd.f32 %v614, %v615
    %v617 = vand.u32 2147483647, %v616
    %v618 = vsub.f32 %v614, %v615
    %v619 = vand.u32 2147483647, %v618
    %v620 = vadd.f32 %v617, %v619
    %v621 = vmul.f32 %v612, %v103
    %v622 = vmul.f32 %v613, %v109
    %v623 = vsub.f32 %v621, %v622
    %v624 = vand.u32 2147483647, %v623
    %v625 = vadd.f32 %v620, %v624
    %v626 = vadd.f32 %v621, %v622
    %v627 = vand.u32 2147483647, %v626
    %v628 = vadd.f32 %v625, %v627
    %v629 = vmul.f32 %v628, 2.0
    %v630 = vsub.f32 %v100, %v109
    %v631 = vsub.f32 %v94, %v103
    %v632 = vsub.f32 %v97, %v106
    %v633 = vmul.f32 %v507, %v630
    %v634 = vmul.f32 %v611, %v631
    %v635 = vadd.f32 %v633, %v634
    %v636 = vand.u32 2147483647, %v635
    %v637 = vsub.f32 %v633, %v634
    %v638 = vand.u32 2147483647, %v637
    %v639 = vadd.f32 %v636, %v638
    %v640 = vmul.f32 %v507, %v631
    %v641 = vmul.f32 %v611, %v630
    %v642 = vsub.f32 %v640, %v641
    %v643 = vand.u32 2147483647, %v642
    %v644 = vadd.f32 %v639, %v643
    %v645 = vadd.f32 %v640, %v641
    %v646 = vand.u32 2147483647, %v645
    %v647 = vadd.f32 %v644, %v646
    %v648 = vmul.f32 %v647, 2.0
    %v649 = vadd.f32 %v629, %v648
    %v650 = vand.u32 2147483647, %v632
    %v651 = vmul.f32 %v650, 4.0
    %v652 = vadd.f32 %v649, %v651
    %v653 = vsub.f32 %v64, %v81
    %v654 = vand.u32 2147483647, %v653
    %v655 = vsub.f32 %v111, %v113
    %v656 = vand.u32 2147483647, %v655
    %v657 = vadd.f32 %v654, %v656
    %v658 = vsub.f32 %v74, %v91
    %v659 = vand.u32 2147483647, %v658
    %v660 = vadd.f32 %v657, %v659
    %v661 = vmul.f32 %v660, 8.0
    %v662 = vadd.f32 %v652, %v661
    %vm663 = vcmask 1040384
    %v664 = vsel %vm663, %v662, 0.0
    %665 = vadd.xlane.f32.xlu0 %v664
    %v666 = vpop.xlane.xlu0 %665
    %v667 = vrot.slane %v666, 4
    %v668 = vadd.f32 %v666, %v667
    %v669 = vrot.slane %v668, 2
    %v670 = vadd.f32 %v668, %v669
    %v671 = vrot.slane %v670, 1
    %v672 = vadd.f32 %v670, %v671
    %s673 = vtos %v672
    %v674 = vstv %s673
    %vm675 = vcmask 0
    %676 = vst.msk [vmem:[#allocation2] sm:$0x1] %vm675, %v674
    // Predicated region
    $region6: #{reg3d_loss_iou.1} parent=1 // pred_check
      _
    $region7: #{reg3d_loss_iou.1} parent=1 // pred_check_branch
      %678 = sbr.rel (0) target = $region9
    $region8: #{reg3d_loss_iou.1} parent=1 // pred_region
      %s680 = ssub.s32 16, 16
      %681 = vsyncadd [#allocation3], %s680
      %s683 = sshll.u32 [#allocation2], 4
      %s684 = int_to_ptr.vmem [resolvable:$true] %s683
      %686 = dma.vmem_to_hbm [thread:$0]  %s684, 16, %s1, [#allocation3]
    $region9: #{reg3d_loss_iou.1} parent=1 // pred_fallthru
      _
    // Predicated region
    $region10: #{reg3d_loss_iou.1} parent=1 // pred_check
      _
    $region11: #{reg3d_loss_iou.1} parent=1 // pred_check_branch
      %688 = sbr.rel (0) target = $region13
    $region12: #{reg3d_loss_iou.1} parent=1 // pred_region
      %689 = dma.done [#allocation3], 16
    $region13: #{reg3d_loss_iou.1} parent=1 // pred_fallthru
      _
    %690 = vsyncpa [#allocation3], 1

</llo_original>
